<compile_context>
chip_gen: v7x
topology: tpu7x:2x2x1
jax: 0.10.0
libtpu: 0.0.40
codegen_flags: <defaults>
</compile_context>

<pallas_src>
import functools

import jax
import jax.numpy as jnp
from jax.experimental import pallas as pl
from jax.experimental.pallas import tpu as pltpu


def _rlfb2_kernel(x_ref, k1_ref, b1_ref, w1_ref,
                  wi1_ref, bi1_ref, wi2_ref, bi2_ref, imask_ref,
                  k3_ref, b3_ref, w3_ref,
                  wd1_ref, bd1_ref, wd2_ref, bd2_ref,
                  w5_ref, b5_ref, o_ref, *, H, W, C, G, shifts):
    f32 = jnp.float32
    HW = H * W
    GC = 16                                   # involution group_channels (fixed in module)

    lrelu = lambda v: jnp.where(v >= 0, v, 0.05 * v)   # LeakyReLU(neg_slope=0.05)

    def shifted(a, s):
        # out[:, p] == a[:, p + s] at every spatially valid position; lane positions
        # that wrapped around are always multiplied by 0 via the precomputed planes.
        return a if s == 0 else pltpu.roll(a, (-s) % HW, axis=1)

    def dw3x3(a, k_ref, b_ref):
        # depthwise 3x3 (+bias): one roll (XLU) + one multiply-add (VPU) per tap
        acc = jnp.zeros((C, HW), f32)
        for t in range(9):
            acc = acc + shifted(a, shifts[t]) * k_ref[t]
        return acc + b_ref[...]

    x = x_ref[0]                                                        # (C, HW), f32

    # ---- c1_r: depthwise 3x3 (+bias) -> pointwise 1x1 (no bias) -> lrelu ------------
    a1 = lrelu(jnp.dot(w1_ref[...], dw3x3(x, k1_ref, b1_ref),
                       preferred_element_type=f32))                     # (C, HW)

    # ---- c2_r: involution(kernel=3, stride=1) ---------------------------------------
    # kernel branch: 1x1 (+folded BN) -> ReLU -> 1x1 (+bias); rows are tap-major.
    wf = jnp.maximum(jnp.dot(wi1_ref[...], a1, preferred_element_type=f32)
                     + bi1_ref[...], 0.0)                               # (Cr, HW)
    wk = (jnp.dot(wi2_ref[...], wf, preferred_element_type=f32)
          + bi2_ref[...]) * imask_ref[...]                              # (9G, HW), masked
    inv = jnp.zeros((C, HW), f32)
    for t in range(9):
        av = shifted(a1, shifts[t])
        wt = wk[t * G:(t + 1) * G, :]                                   # (G, HW)
        if G > 1:                              # one weight row per 16-channel group
            wt = jnp.repeat(wt, GC, axis=0)
        inv = inv + av * wt
    a2 = lrelu(inv)

    # ---- c3_r: depthwise 3x3 (+bias) -> pointwise 1x1 (no bias) -> lrelu ------------
    a3 = lrelu(jnp.dot(w3_ref[...], dw3x3(a2, k3_ref, b3_ref),
                       preferred_element_type=f32))                     # (C, HW)

    # ---- CCA: (std_c + mean_c) -> 1x1 -> lrelu -> 1x1 (+folded BN) -> sigmoid -------
    mean_c = jnp.mean(a3, axis=1, keepdims=True)                        # (C, 1)
    var_c = jnp.mean((a3 - mean_c) ** 2, axis=1, keepdims=True)
    y = jnp.sqrt(var_c) + mean_c                                        # (C, 1)
    z = lrelu(jnp.sum(wd1_ref[...] * y, axis=0, keepdims=True)
              + bd1_ref[...])                                           # (1, Cd)
    att = jnp.sum(wd2_ref[...] * z, axis=1, keepdims=True) + bd2_ref[...]   # (C, 1)
    att = 1.0 / (1.0 + jnp.exp(-att))                                   # sigmoid

    # ---- c5 (1x1 + bias) and residual ------------------------------------------------
    out = jnp.dot(w5_ref[...], a3 * att, preferred_element_type=f32) + b5_ref[...]
    o_ref[...] = (out + x).reshape(1, C, HW).astype(o_ref.dtype)


@jax.jit
def rlfb2_pallas(x_nchw, p):
    """x_nchw: (N, C, H, W) f32.  p: dict of PyTorch-layout parameters (see __main__)."""
    eps = 1e-5
    N, C, H, W = x_nchw.shape
    assert C % 16 == 0, "involution group_channels=16 and CCA reduction=16 require 16 | C"
    Cr, G, Cd = C // 4, C // 16, max(C // 16, 1)
    HW = H * W

    x = x_nchw.reshape(N, C, HW).astype(jnp.float32)     # free reshape, stays channel-major

    # 3x3 tap geometry: tap t = (dh+1)*3 + (dw+1); flat lane shift dh*W + dw.
    taps = [(dh, dw) for dh in (-1, 0, 1) for dw in (-1, 0, 1)]
    shifts = tuple(dh * W + dw for dh, dw in taps)
    hh = jnp.arange(H)[:, None]
    ww = jnp.arange(W)[None, :]
    valid = jnp.stack(
        [(((hh + dh) >= 0) & ((hh + dh) < H) & ((ww + dw) >= 0) & ((ww + dw) < W))
         .reshape(HW) for dh, dw in taps]).astype(jnp.float32)          # (9, HW)

    def dw_planes(kdw):       # torch depthwise (C,1,3,3) -> (9, C, HW) weight*mask planes
        k = jnp.transpose(kdw[:, 0, :, :].reshape(C, 9), (1, 0))        # (9, C)
        return (k[:, :, None] * valid[:, None, :]).astype(jnp.float32)

    k1, b1 = dw_planes(p['k1dw']), p['b1dw'].reshape(C, 1).astype(jnp.float32)
    w1 = p['w1pw'][:, :, 0, 0].astype(jnp.float32)                      # (C, C)  (O, I)
    # involution conv1 + BN folded (inference)
    s1 = p['bn1_g'] / jnp.sqrt(p['bn1_v'] + eps)
    wi1 = (p['wi1'][:, :, 0, 0] * s1[:, None]).astype(jnp.float32)      # (Cr, C)
    bi1 = (p['bn1_b'] - p['bn1_m'] * s1).reshape(Cr, 1).astype(jnp.float32)
    # involution conv2: reorder output rows (g*9+t) -> (t*G+g)   (tap-major)
    order = jnp.arange(9 * G).reshape(G, 9).T.reshape(-1)
    wi2 = p['wi2'][:, :, 0, 0][order].astype(jnp.float32)               # (9G, Cr)
    bi2 = p['bi2'][order].reshape(9 * G, 1).astype(jnp.float32)
    imask = jnp.repeat(valid, G, axis=0)                                # (9G, HW)
    k3, b3 = dw_planes(p['k3dw']), p['b3dw'].reshape(C, 1).astype(jnp.float32)
    w3 = p['w3pw'][:, :, 0, 0].astype(jnp.float32)
    # CCA squeeze-excite; second conv's BN folded (inference)
    wd1 = jnp.transpose(p['wd1'][:, :, 0, 0], (1, 0)).astype(jnp.float32)   # (C, Cd)
    bd1 = p['bd1'].reshape(1, Cd).astype(jnp.float32)
    sd = p['bnd_g'] / jnp.sqrt(p['bnd_v'] + eps)
    wd2 = (p['wd2'][:, :, 0, 0] * sd[:, None]).astype(jnp.float32)          # (C, Cd)
    bd2 = ((p['bd2'] - p['bnd_m']) * sd + p['bnd_b']).reshape(C, 1).astype(jnp.float32)
    w5 = p['w5'][:, :, 0, 0].astype(jnp.float32)
    b5 = p['b5'].reshape(C, 1).astype(jnp.float32)

    kernel = functools.partial(_rlfb2_kernel, H=H, W=W, C=C, G=G, shifts=shifts)
    weights = (k1, b1, w1, wi1, bi1, wi2, bi2, imask, k3, b3, w3,
               wd1, bd1, wd2, bd2, w5, b5)

    def cfull(a):             # grid-constant (weight) block: full array, fixed index
        nd = a.ndim
        return pl.BlockSpec(a.shape, lambda b: (0,) * nd)

    out = pl.pallas_call(
        kernel,
        out_shape=jax.ShapeDtypeStruct((N, C, HW), jnp.float32),
        grid_spec=pltpu.PrefetchScalarGridSpec(
            num_scalar_prefetch=0,
            grid=(N,),
            in_specs=[pl.BlockSpec((1, C, HW), lambda b: (b, 0, 0))]    # x (single DMA)
                     + [cfull(a) for a in weights],
            out_specs=pl.BlockSpec((1, C, HW), lambda b: (b, 0, 0)),
        ),
        compiler_params=pltpu.CompilerParams(
            dimension_semantics=("parallel",),        # batch across TensorCores on v7x
            vmem_limit_bytes=32 * 1024 * 1024),
    )(x, *weights)
    return out.reshape(N, C, H, W)


def _rlfb2_reference(x, p, *, eps=1e-5):
    """Pure-JAX NCHW reference mirroring the PyTorch module (BN in eval mode)."""
    lrelu = lambda v: jnp.where(v >= 0, v, 0.05 * v)
    hi = jax.lax.Precision.HIGHEST

    def conv1x1(t, w, b=None):
        dn = jax.lax.conv_dimension_numbers(t.shape, w.shape, ('NCHW', 'OIHW', 'NCHW'))
        y = jax.lax.conv_general_dilated(t, w, (1, 1), 'SAME',
                                         dimension_numbers=dn, precision=hi)
        return y if b is None else y + b.reshape(1, -1, 1, 1)

    def dwconv3x3(t, w, b):
        dn = jax.lax.conv_dimension_numbers(t.shape, w.shape, ('NCHW', 'OIHW', 'NCHW'))
        y = jax.lax.conv_general_dilated(t, w, (1, 1), 'SAME', dimension_numbers=dn,
                                         feature_group_count=t.shape[1], precision=hi)
        return y + b.reshape(1, -1, 1, 1)

    def bn(t, g, b, m, v):
        return ((t - m.reshape(1, -1, 1, 1)) / jnp.sqrt(v.reshape(1, -1, 1, 1) + eps)
                * g.reshape(1, -1, 1, 1) + b.reshape(1, -1, 1, 1))

    def involution(t):
        N, C, H, W = t.shape
        u = jnp.maximum(bn(conv1x1(t, p['wi1']), p['bn1_g'], p['bn1_b'],
                           p['bn1_m'], p['bn1_v']), 0.0)
        wk = conv1x1(u, p['wi2'], p['bi2'])                    # (N, 9G, H, W), chan=g*9+t
        tp = jnp.pad(t, ((0, 0), (0, 0), (1, 1), (1, 1)))
        out = jnp.zeros_like(t)
        for tap in range(9):
            kh, kw = tap // 3, tap % 3
            wt = jnp.repeat(wk[:, tap::9, :, :], 16, axis=1)   # per-group -> per-channel
            out = out + wt * tp[:, :, kh:kh + H, kw:kw + W]
        return out

    def cca(t):
        mean = jnp.mean(t, axis=(2, 3), keepdims=True)
        std = jnp.sqrt(jnp.mean((t - mean) ** 2, axis=(2, 3), keepdims=True))
        y = std + mean
        y = lrelu(conv1x1(y, p['wd1'], p['bd1']))
        y = conv1x1(y, p['wd2'], p['bd2'])
        y = jax.nn.sigmoid(bn(y, p['bnd_g'], p['bnd_b'], p['bnd_m'], p['bnd_v']))
        return t * y

    out = lrelu(conv1x1(dwconv3x3(x, p['k1dw'], p['b1dw']), p['w1pw']))
    out = lrelu(involution(out))
    out = lrelu(conv1x1(dwconv3x3(out, p['k3dw'], p['b3dw']), p['w3pw']))
    out = conv1x1(cca(out), p['w5'], p['b5'])
    return out + x


if __name__ == "__main__":
    # C must be a multiple of 16 (involution group_channels=16, CCA reduction=16);
    # C=16 is the smallest width the module supports.
    N, C, H, W = 2, 16, 16, 16
    Cr, G, Cd = C // 4, C // 16, max(C // 16, 1)

    keys = iter(jax.random.split(jax.random.PRNGKey(0), 32))

    def rnd(shape, scale=0.1):
        return scale * jax.random.normal(next(keys), shape, dtype=jnp.float32)

    x = jax.random.normal(next(keys), (N, C, H, W), dtype=jnp.float32)
    p = dict(
        # c1_r: DepthWiseConv (depthwise 3x3 with bias, then pointwise 1x1 without bias)
        k1dw=rnd((C, 1, 3, 3)), b1dw=rnd((C,)), w1pw=rnd((C, C, 1, 1)),
        # c2_r: involution — conv1 (1x1, no bias) + BN + ReLU, conv2 (1x1, bias)
        wi1=rnd((Cr, C, 1, 1)),
        bn1_g=1.0 + rnd((Cr,)), bn1_b=rnd((Cr,)), bn1_m=rnd((Cr,)),
        bn1_v=1.0 + 0.5 * jax.random.uniform(next(keys), (Cr,), dtype=jnp.float32),
        wi2=rnd((9 * G, Cr, 1, 1)), bi2=rnd((9 * G,)),
        # c3_r: DepthWiseConv
        k3dw=rnd((C, 1, 3, 3)), b3dw=rnd((C,)), w3pw=rnd((C, C, 1, 1)),
        # cca: conv_du = 1x1 -> lrelu -> 1x1 -> BN -> sigmoid
        wd1=rnd((Cd, C, 1, 1)), bd1=rnd((Cd,)),
        wd2=rnd((C, Cd, 1, 1)), bd2=rnd((C,)),
        bnd_g=1.0 + rnd((C,)), bnd_b=rnd((C,)), bnd_m=rnd((C,)),
        bnd_v=1.0 + 0.5 * jax.random.uniform(next(keys), (C,), dtype=jnp.float32),
        # c5: 1x1 conv with bias
        w5=rnd((C, C, 1, 1)), b5=rnd((C,)),
    )

    out = jax.block_until_ready(rlfb2_pallas(x, p))
    ref = jax.block_until_ready(_rlfb2_reference(x, p))
    assert out.shape == (N, C, H, W)
    err = float(jnp.max(jnp.abs(out - ref)))
    assert jnp.allclose(out, ref, atol=1e-2, rtol=1e-2), \
        f"mismatch vs reference (max abs err {err})"
    print("KERNEL_OK")
</pallas_src>

<mosaic_0001>
module attributes {stable_mosaic.version = 11 : i64} {
  func.func @_rlfb2_kernel(%arg0: i32, %arg1: memref<1x16x256xf32, #tpu.memory_space<vmem>>, %arg2: memref<9x16x256xf32, #tpu.memory_space<vmem>>, %arg3: memref<16x1xf32, #tpu.memory_space<vmem>>, %arg4: memref<16x16xf32, #tpu.memory_space<vmem>>, %arg5: memref<4x16xf32, #tpu.memory_space<vmem>>, %arg6: memref<4x1xf32, #tpu.memory_space<vmem>>, %arg7: memref<9x4xf32, #tpu.memory_space<vmem>>, %arg8: memref<9x1xf32, #tpu.memory_space<vmem>>, %arg9: memref<9x256xf32, #tpu.memory_space<vmem>>, %arg10: memref<9x16x256xf32, #tpu.memory_space<vmem>>, %arg11: memref<16x1xf32, #tpu.memory_space<vmem>>, %arg12: memref<16x16xf32, #tpu.memory_space<vmem>>, %arg13: memref<16x1xf32, #tpu.memory_space<vmem>>, %arg14: memref<1x1xf32, #tpu.memory_space<vmem>>, %arg15: memref<16x1xf32, #tpu.memory_space<vmem>>, %arg16: memref<16x1xf32, #tpu.memory_space<vmem>>, %arg17: memref<16x16xf32, #tpu.memory_space<vmem>>, %arg18: memref<16x1xf32, #tpu.memory_space<vmem>>, %arg19: memref<1x16x256xf32, #tpu.memory_space<vmem>>) attributes {dimension_semantics = [#tpu.dimension_semantics<parallel>], iteration_bounds = array<i64: 2>, scalar_prefetch = 0 : i64, scratch_operands = 0 : i64, tpu.core_type = #tpu.core_type<tc>, window_params = [{transform_indices = @transform_0, window_bounds = array<i64: 1, 16, 256>}, {pipeline_mode = #tpu.pipeline_mode<synchronous>, transform_indices = @transform_1, window_bounds = array<i64: 9, 16, 256>}, {pipeline_mode = #tpu.pipeline_mode<synchronous>, transform_indices = @transform_2, window_bounds = array<i64: 16, 1>}, {pipeline_mode = #tpu.pipeline_mode<synchronous>, transform_indices = @transform_3, window_bounds = array<i64: 16, 16>}, {pipeline_mode = #tpu.pipeline_mode<synchronous>, transform_indices = @transform_4, window_bounds = array<i64: 4, 16>}, {pipeline_mode = #tpu.pipeline_mode<synchronous>, transform_indices = @transform_5, window_bounds = array<i64: 4, 1>}, {pipeline_mode = #tpu.pipeline_mode<synchronous>, transform_indices = @transform_6, window_bounds = array<i64: 9, 4>}, {pipeline_mode = #tpu.pipeline_mode<synchronous>, transform_indices = @transform_7, window_bounds = array<i64: 9, 1>}, {pipeline_mode = #tpu.pipeline_mode<synchronous>, transform_indices = @transform_8, window_bounds = array<i64: 9, 256>}, {pipeline_mode = #tpu.pipeline_mode<synchronous>, transform_indices = @transform_9, window_bounds = array<i64: 9, 16, 256>}, {pipeline_mode = #tpu.pipeline_mode<synchronous>, transform_indices = @transform_10, window_bounds = array<i64: 16, 1>}, {pipeline_mode = #tpu.pipeline_mode<synchronous>, transform_indices = @transform_11, window_bounds = array<i64: 16, 16>}, {pipeline_mode = #tpu.pipeline_mode<synchronous>, transform_indices = @transform_12, window_bounds = array<i64: 16, 1>}, {pipeline_mode = #tpu.pipeline_mode<synchronous>, transform_indices = @transform_13, window_bounds = array<i64: 1, 1>}, {pipeline_mode = #tpu.pipeline_mode<synchronous>, transform_indices = @transform_14, window_bounds = array<i64: 16, 1>}, {pipeline_mode = #tpu.pipeline_mode<synchronous>, transform_indices = @transform_15, window_bounds = array<i64: 16, 1>}, {pipeline_mode = #tpu.pipeline_mode<synchronous>, transform_indices = @transform_16, window_bounds = array<i64: 16, 16>}, {pipeline_mode = #tpu.pipeline_mode<synchronous>, transform_indices = @transform_17, window_bounds = array<i64: 16, 1>}, {transform_indices = @transform_18, window_bounds = array<i64: 1, 16, 256>}]} {
    %c0 = arith.constant 0 : index
    %c0_0 = arith.constant 0 : index
    %c0_1 = arith.constant 0 : index
    %0 = vector.load %arg1[%c0, %c0_0, %c0_1] : memref<1x16x256xf32, #tpu.memory_space<vmem>>, vector<1x16x256xf32>
    %1 = vector.shape_cast %0 : vector<1x16x256xf32> to vector<16x256xf32>
    %c0_2 = arith.constant 0 : index
    %c0_3 = arith.constant 0 : index
    %2 = vector.load %arg4[%c0_2, %c0_3] : memref<16x16xf32, #tpu.memory_space<vmem>>, vector<16x16xf32>
    %cst = arith.constant 0.000000e+00 : f32
    %3 = vector.broadcast %cst : f32 to vector<16x256xf32>
    %c17_i32 = arith.constant 17 : i32
    %4 = tpu.dynamic_rotate %1 by %c17_i32 dim 1 : vector<16x256xf32>, i32 -> vector<16x256xf32>
    %c0_4 = arith.constant 0 : index
    %c0_5 = arith.constant 0 : index
    %c0_6 = arith.constant 0 : index
    %5 = vector.load %arg2[%c0_4, %c0_5, %c0_6] : memref<9x16x256xf32, #tpu.memory_space<vmem>>, vector<1x16x256xf32>
    %6 = vector.shape_cast %5 : vector<1x16x256xf32> to vector<16x256xf32>
    %7 = arith.mulf %4, %6 : vector<16x256xf32>
    %8 = arith.addf %3, %7 : vector<16x256xf32>
    %c16_i32 = arith.constant 16 : i32
    %9 = tpu.dynamic_rotate %1 by %c16_i32 dim 1 : vector<16x256xf32>, i32 -> vector<16x256xf32>
    %c1 = arith.constant 1 : index
    %c0_7 = arith.constant 0 : index
    %c0_8 = arith.constant 0 : index
    %10 = vector.load %arg2[%c1, %c0_7, %c0_8] : memref<9x16x256xf32, #tpu.memory_space<vmem>>, vector<1x16x256xf32>
    %11 = vector.shape_cast %10 : vector<1x16x256xf32> to vector<16x256xf32>
    %12 = arith.mulf %9, %11 : vector<16x256xf32>
    %13 = arith.addf %8, %12 : vector<16x256xf32>
    %c15_i32 = arith.constant 15 : i32
    %14 = tpu.dynamic_rotate %1 by %c15_i32 dim 1 : vector<16x256xf32>, i32 -> vector<16x256xf32>
    %c2 = arith.constant 2 : index
    %c0_9 = arith.constant 0 : index
    %c0_10 = arith.constant 0 : index
    %15 = vector.load %arg2[%c2, %c0_9, %c0_10] : memref<9x16x256xf32, #tpu.memory_space<vmem>>, vector<1x16x256xf32>
    %16 = vector.shape_cast %15 : vector<1x16x256xf32> to vector<16x256xf32>
    %17 = arith.mulf %14, %16 : vector<16x256xf32>
    %18 = arith.addf %13, %17 : vector<16x256xf32>
    %c1_i32 = arith.constant 1 : i32
    %19 = tpu.dynamic_rotate %1 by %c1_i32 dim 1 : vector<16x256xf32>, i32 -> vector<16x256xf32>
    %c3 = arith.constant 3 : index
    %c0_11 = arith.constant 0 : index
    %c0_12 = arith.constant 0 : index
    %20 = vector.load %arg2[%c3, %c0_11, %c0_12] : memref<9x16x256xf32, #tpu.memory_space<vmem>>, vector<1x16x256xf32>
    %21 = vector.shape_cast %20 : vector<1x16x256xf32> to vector<16x256xf32>
    %22 = arith.mulf %19, %21 : vector<16x256xf32>
    %23 = arith.addf %18, %22 : vector<16x256xf32>
    %c4 = arith.constant 4 : index
    %c0_13 = arith.constant 0 : index
    %c0_14 = arith.constant 0 : index
    %24 = vector.load %arg2[%c4, %c0_13, %c0_14] : memref<9x16x256xf32, #tpu.memory_space<vmem>>, vector<1x16x256xf32>
    %25 = vector.shape_cast %24 : vector<1x16x256xf32> to vector<16x256xf32>
    %26 = arith.mulf %1, %25 : vector<16x256xf32>
    %27 = arith.addf %23, %26 : vector<16x256xf32>
    %c255_i32 = arith.constant 255 : i32
    %28 = tpu.dynamic_rotate %1 by %c255_i32 dim 1 : vector<16x256xf32>, i32 -> vector<16x256xf32>
    %c5 = arith.constant 5 : index
    %c0_15 = arith.constant 0 : index
    %c0_16 = arith.constant 0 : index
    %29 = vector.load %arg2[%c5, %c0_15, %c0_16] : memref<9x16x256xf32, #tpu.memory_space<vmem>>, vector<1x16x256xf32>
    %30 = vector.shape_cast %29 : vector<1x16x256xf32> to vector<16x256xf32>
    %31 = arith.mulf %28, %30 : vector<16x256xf32>
    %32 = arith.addf %27, %31 : vector<16x256xf32>
    %c241_i32 = arith.constant 241 : i32
    %33 = tpu.dynamic_rotate %1 by %c241_i32 dim 1 : vector<16x256xf32>, i32 -> vector<16x256xf32>
    %c6 = arith.constant 6 : index
    %c0_17 = arith.constant 0 : index
    %c0_18 = arith.constant 0 : index
    %34 = vector.load %arg2[%c6, %c0_17, %c0_18] : memref<9x16x256xf32, #tpu.memory_space<vmem>>, vector<1x16x256xf32>
    %35 = vector.shape_cast %34 : vector<1x16x256xf32> to vector<16x256xf32>
    %36 = arith.mulf %33, %35 : vector<16x256xf32>
    %37 = arith.addf %32, %36 : vector<16x256xf32>
    %c240_i32 = arith.constant 240 : i32
    %38 = tpu.dynamic_rotate %1 by %c240_i32 dim 1 : vector<16x256xf32>, i32 -> vector<16x256xf32>
    %c7 = arith.constant 7 : index
    %c0_19 = arith.constant 0 : index
    %c0_20 = arith.constant 0 : index
    %39 = vector.load %arg2[%c7, %c0_19, %c0_20] : memref<9x16x256xf32, #tpu.memory_space<vmem>>, vector<1x16x256xf32>
    %40 = vector.shape_cast %39 : vector<1x16x256xf32> to vector<16x256xf32>
    %41 = arith.mulf %38, %40 : vector<16x256xf32>
    %42 = arith.addf %37, %41 : vector<16x256xf32>
    %c239_i32 = arith.constant 239 : i32
    %43 = tpu.dynamic_rotate %1 by %c239_i32 dim 1 : vector<16x256xf32>, i32 -> vector<16x256xf32>
    %c8 = arith.constant 8 : index
    %c0_21 = arith.constant 0 : index
    %c0_22 = arith.constant 0 : index
    %44 = vector.load %arg2[%c8, %c0_21, %c0_22] : memref<9x16x256xf32, #tpu.memory_space<vmem>>, vector<1x16x256xf32>
    %45 = vector.shape_cast %44 : vector<1x16x256xf32> to vector<16x256xf32>
    %46 = arith.mulf %43, %45 : vector<16x256xf32>
    %47 = arith.addf %42, %46 : vector<16x256xf32>
    %c0_23 = arith.constant 0 : index
    %c0_24 = arith.constant 0 : index
    %48 = vector.load %arg3[%c0_23, %c0_24] : memref<16x1xf32, #tpu.memory_space<vmem>>, vector<16x1xf32>
    %49 = vector.broadcast %48 : vector<16x1xf32> to vector<16x256xf32>
    %50 = arith.addf %47, %49 : vector<16x256xf32>
    %cst_25 = arith.constant dense<0.000000e+00> : vector<16x256xf32>
    %51 = tpu.matmul %2, %50, %cst_25 {dimension_numbers = #tpu.dot_dimension_numbers<[1], [0], [0], [1], [0, 0, 1, 1], [], []>} : vector<16x16xf32>, vector<16x256xf32>, vector<16x256xf32> -> vector<16x256xf32>
    %cst_26 = arith.constant 0.000000e+00 : f32
    %52 = vector.broadcast %cst_26 : f32 to vector<16x256xf32>
    %53 = arith.cmpf oge, %51, %52 : vector<16x256xf32>
    %cst_27 = arith.constant 5.000000e-02 : f32
    %54 = vector.broadcast %cst_27 : f32 to vector<16x256xf32>
    %55 = arith.mulf %54, %51 : vector<16x256xf32>
    %56 = arith.select %53, %51, %55 : vector<16x256xi1>, vector<16x256xf32>
    %c0_28 = arith.constant 0 : index
    %c0_29 = arith.constant 0 : index
    %57 = vector.load %arg5[%c0_28, %c0_29] : memref<4x16xf32, #tpu.memory_space<vmem>>, vector<4x16xf32>
    %cst_30 = arith.constant dense<0.000000e+00> : vector<4x256xf32>
    %58 = tpu.matmul %57, %56, %cst_30 {dimension_numbers = #tpu.dot_dimension_numbers<[1], [0], [0], [1], [0, 0, 1, 1], [], []>} : vector<4x16xf32>, vector<16x256xf32>, vector<4x256xf32> -> vector<4x256xf32>
    %c0_31 = arith.constant 0 : index
    %c0_32 = arith.constant 0 : index
    %59 = vector.load %arg6[%c0_31, %c0_32] : memref<4x1xf32, #tpu.memory_space<vmem>>, vector<4x1xf32>
    %60 = vector.broadcast %59 : vector<4x1xf32> to vector<4x256xf32>
    %61 = arith.addf %58, %60 : vector<4x256xf32>
    %cst_33 = arith.constant 0.000000e+00 : f32
    %62 = vector.broadcast %cst_33 : f32 to vector<4x256xf32>
    %63 = arith.maximumf %61, %62 : vector<4x256xf32>
    %c0_34 = arith.constant 0 : index
    %c0_35 = arith.constant 0 : index
    %64 = vector.load %arg7[%c0_34, %c0_35] : memref<9x4xf32, #tpu.memory_space<vmem>>, vector<9x4xf32>
    %cst_36 = arith.constant dense<0.000000e+00> : vector<9x256xf32>
    %65 = tpu.matmul %64, %63, %cst_36 {dimension_numbers = #tpu.dot_dimension_numbers<[1], [0], [0], [1], [0, 0, 1, 1], [], []>} : vector<9x4xf32>, vector<4x256xf32>, vector<9x256xf32> -> vector<9x256xf32>
    %c0_37 = arith.constant 0 : index
    %c0_38 = arith.constant 0 : index
    %66 = vector.load %arg8[%c0_37, %c0_38] : memref<9x1xf32, #tpu.memory_space<vmem>>, vector<9x1xf32>
    %67 = vector.broadcast %66 : vector<9x1xf32> to vector<9x256xf32>
    %68 = arith.addf %65, %67 : vector<9x256xf32>
    %c0_39 = arith.constant 0 : index
    %c0_40 = arith.constant 0 : index
    %69 = vector.load %arg9[%c0_39, %c0_40] : memref<9x256xf32, #tpu.memory_space<vmem>>, vector<9x256xf32>
    %70 = arith.mulf %68, %69 : vector<9x256xf32>
    %cst_41 = arith.constant 0.000000e+00 : f32
    %71 = vector.broadcast %cst_41 : f32 to vector<16x256xf32>
    %c17_i32_42 = arith.constant 17 : i32
    %72 = tpu.dynamic_rotate %56 by %c17_i32_42 dim 1 : vector<16x256xf32>, i32 -> vector<16x256xf32>
    %73 = vector.extract_strided_slice %70 {offsets = [0, 0], sizes = [1, 256], strides = [1, 1]} : vector<9x256xf32> to vector<1x256xf32>
    %74 = vector.broadcast %73 : vector<1x256xf32> to vector<16x256xf32>
    %75 = arith.mulf %72, %74 : vector<16x256xf32>
    %76 = arith.addf %71, %75 : vector<16x256xf32>
    %c16_i32_43 = arith.constant 16 : i32
    %77 = tpu.dynamic_rotate %56 by %c16_i32_43 dim 1 : vector<16x256xf32>, i32 -> vector<16x256xf32>
    %78 = vector.extract_strided_slice %70 {offsets = [1, 0], sizes = [1, 256], strides = [1, 1]} : vector<9x256xf32> to vector<1x256xf32>
    %79 = vector.broadcast %78 : vector<1x256xf32> to vector<16x256xf32>
    %80 = arith.mulf %77, %79 : vector<16x256xf32>
    %81 = arith.addf %76, %80 : vector<16x256xf32>
    %c15_i32_44 = arith.constant 15 : i32
    %82 = tpu.dynamic_rotate %56 by %c15_i32_44 dim 1 : vector<16x256xf32>, i32 -> vector<16x256xf32>
    %83 = vector.extract_strided_slice %70 {offsets = [2, 0], sizes = [1, 256], strides = [1, 1]} : vector<9x256xf32> to vector<1x256xf32>
    %84 = vector.broadcast %83 : vector<1x256xf32> to vector<16x256xf32>
    %85 = arith.mulf %82, %84 : vector<16x256xf32>
    %86 = arith.addf %81, %85 : vector<16x256xf32>
    %c1_i32_45 = arith.constant 1 : i32
    %87 = tpu.dynamic_rotate %56 by %c1_i32_45 dim 1 : vector<16x256xf32>, i32 -> vector<16x256xf32>
    %88 = vector.extract_strided_slice %70 {offsets = [3, 0], sizes = [1, 256], strides = [1, 1]} : vector<9x256xf32> to vector<1x256xf32>
    %89 = vector.broadcast %88 : vector<1x256xf32> to vector<16x256xf32>
    %90 = arith.mulf %87, %89 : vector<16x256xf32>
    %91 = arith.addf %86, %90 : vector<16x256xf32>
    %92 = vector.extract_strided_slice %70 {offsets = [4, 0], sizes = [1, 256], strides = [1, 1]} : vector<9x256xf32> to vector<1x256xf32>
    %93 = vector.broadcast %92 : vector<1x256xf32> to vector<16x256xf32>
    %94 = arith.mulf %56, %93 : vector<16x256xf32>
    %95 = arith.addf %91, %94 : vector<16x256xf32>
    %c255_i32_46 = arith.constant 255 : i32
    %96 = tpu.dynamic_rotate %56 by %c255_i32_46 dim 1 : vector<16x256xf32>, i32 -> vector<16x256xf32>
    %97 = vector.extract_strided_slice %70 {offsets = [5, 0], sizes = [1, 256], strides = [1, 1]} : vector<9x256xf32> to vector<1x256xf32>
    %98 = vector.broadcast %97 : vector<1x256xf32> to vector<16x256xf32>
    %99 = arith.mulf %96, %98 : vector<16x256xf32>
    %100 = arith.addf %95, %99 : vector<16x256xf32>
    %c241_i32_47 = arith.constant 241 : i32
    %101 = tpu.dynamic_rotate %56 by %c241_i32_47 dim 1 : vector<16x256xf32>, i32 -> vector<16x256xf32>
    %102 = vector.extract_strided_slice %70 {offsets = [6, 0], sizes = [1, 256], strides = [1, 1]} : vector<9x256xf32> to vector<1x256xf32>
    %103 = vector.broadcast %102 : vector<1x256xf32> to vector<16x256xf32>
    %104 = arith.mulf %101, %103 : vector<16x256xf32>
    %105 = arith.addf %100, %104 : vector<16x256xf32>
    %c240_i32_48 = arith.constant 240 : i32
    %106 = tpu.dynamic_rotate %56 by %c240_i32_48 dim 1 : vector<16x256xf32>, i32 -> vector<16x256xf32>
    %107 = vector.extract_strided_slice %70 {offsets = [7, 0], sizes = [1, 256], strides = [1, 1]} : vector<9x256xf32> to vector<1x256xf32>
    %108 = vector.broadcast %107 : vector<1x256xf32> to vector<16x256xf32>
    %109 = arith.mulf %106, %108 : vector<16x256xf32>
    %110 = arith.addf %105, %109 : vector<16x256xf32>
    %c239_i32_49 = arith.constant 239 : i32
    %111 = tpu.dynamic_rotate %56 by %c239_i32_49 dim 1 : vector<16x256xf32>, i32 -> vector<16x256xf32>
    %112 = vector.extract_strided_slice %70 {offsets = [8, 0], sizes = [1, 256], strides = [1, 1]} : vector<9x256xf32> to vector<1x256xf32>
    %113 = vector.broadcast %112 : vector<1x256xf32> to vector<16x256xf32>
    %114 = arith.mulf %111, %113 : vector<16x256xf32>
    %115 = arith.addf %110, %114 : vector<16x256xf32>
    %cst_50 = arith.constant 0.000000e+00 : f32
    %116 = vector.broadcast %cst_50 : f32 to vector<16x256xf32>
    %117 = arith.cmpf oge, %115, %116 : vector<16x256xf32>
    %cst_51 = arith.constant 5.000000e-02 : f32
    %118 = vector.broadcast %cst_51 : f32 to vector<16x256xf32>
    %119 = arith.mulf %118, %115 : vector<16x256xf32>
    %120 = arith.select %117, %115, %119 : vector<16x256xi1>, vector<16x256xf32>
    %c0_52 = arith.constant 0 : index
    %c0_53 = arith.constant 0 : index
    %121 = vector.load %arg12[%c0_52, %c0_53] : memref<16x16xf32, #tpu.memory_space<vmem>>, vector<16x16xf32>
    %cst_54 = arith.constant 0.000000e+00 : f32
    %122 = vector.broadcast %cst_54 : f32 to vector<16x256xf32>
    %c17_i32_55 = arith.constant 17 : i32
    %123 = tpu.dynamic_rotate %120 by %c17_i32_55 dim 1 : vector<16x256xf32>, i32 -> vector<16x256xf32>
    %c0_56 = arith.constant 0 : index
    %c0_57 = arith.constant 0 : index
    %c0_58 = arith.constant 0 : index
    %124 = vector.load %arg10[%c0_56, %c0_57, %c0_58] : memref<9x16x256xf32, #tpu.memory_space<vmem>>, vector<1x16x256xf32>
    %125 = vector.shape_cast %124 : vector<1x16x256xf32> to vector<16x256xf32>
    %126 = arith.mulf %123, %125 : vector<16x256xf32>
    %127 = arith.addf %122, %126 : vector<16x256xf32>
    %c16_i32_59 = arith.constant 16 : i32
    %128 = tpu.dynamic_rotate %120 by %c16_i32_59 dim 1 : vector<16x256xf32>, i32 -> vector<16x256xf32>
    %c1_60 = arith.constant 1 : index
    %c0_61 = arith.constant 0 : index
    %c0_62 = arith.constant 0 : index
    %129 = vector.load %arg10[%c1_60, %c0_61, %c0_62] : memref<9x16x256xf32, #tpu.memory_space<vmem>>, vector<1x16x256xf32>
    %130 = vector.shape_cast %129 : vector<1x16x256xf32> to vector<16x256xf32>
    %131 = arith.mulf %128, %130 : vector<16x256xf32>
    %132 = arith.addf %127, %131 : vector<16x256xf32>
    %c15_i32_63 = arith.constant 15 : i32
    %133 = tpu.dynamic_rotate %120 by %c15_i32_63 dim 1 : vector<16x256xf32>, i32 -> vector<16x256xf32>
    %c2_64 = arith.constant 2 : index
    %c0_65 = arith.constant 0 : index
    %c0_66 = arith.constant 0 : index
    %134 = vector.load %arg10[%c2_64, %c0_65, %c0_66] : memref<9x16x256xf32, #tpu.memory_space<vmem>>, vector<1x16x256xf32>
    %135 = vector.shape_cast %134 : vector<1x16x256xf32> to vector<16x256xf32>
    %136 = arith.mulf %133, %135 : vector<16x256xf32>
    %137 = arith.addf %132, %136 : vector<16x256xf32>
    %c1_i32_67 = arith.constant 1 : i32
    %138 = tpu.dynamic_rotate %120 by %c1_i32_67 dim 1 : vector<16x256xf32>, i32 -> vector<16x256xf32>
    %c3_68 = arith.constant 3 : index
    %c0_69 = arith.constant 0 : index
    %c0_70 = arith.constant 0 : index
    %139 = vector.load %arg10[%c3_68, %c0_69, %c0_70] : memref<9x16x256xf32, #tpu.memory_space<vmem>>, vector<1x16x256xf32>
    %140 = vector.shape_cast %139 : vector<1x16x256xf32> to vector<16x256xf32>
    %141 = arith.mulf %138, %140 : vector<16x256xf32>
    %142 = arith.addf %137, %141 : vector<16x256xf32>
    %c4_71 = arith.constant 4 : index
    %c0_72 = arith.constant 0 : index
    %c0_73 = arith.constant 0 : index
    %143 = vector.load %arg10[%c4_71, %c0_72, %c0_73] : memref<9x16x256xf32, #tpu.memory_space<vmem>>, vector<1x16x256xf32>
    %144 = vector.shape_cast %143 : vector<1x16x256xf32> to vector<16x256xf32>
    %145 = arith.mulf %120, %144 : vector<16x256xf32>
    %146 = arith.addf %142, %145 : vector<16x256xf32>
    %c255_i32_74 = arith.constant 255 : i32
    %147 = tpu.dynamic_rotate %120 by %c255_i32_74 dim 1 : vector<16x256xf32>, i32 -> vector<16x256xf32>
    %c5_75 = arith.constant 5 : index
    %c0_76 = arith.constant 0 : index
    %c0_77 = arith.constant 0 : index
    %148 = vector.load %arg10[%c5_75, %c0_76, %c0_77] : memref<9x16x256xf32, #tpu.memory_space<vmem>>, vector<1x16x256xf32>
    %149 = vector.shape_cast %148 : vector<1x16x256xf32> to vector<16x256xf32>
    %150 = arith.mulf %147, %149 : vector<16x256xf32>
    %151 = arith.addf %146, %150 : vector<16x256xf32>
    %c241_i32_78 = arith.constant 241 : i32
    %152 = tpu.dynamic_rotate %120 by %c241_i32_78 dim 1 : vector<16x256xf32>, i32 -> vector<16x256xf32>
    %c6_79 = arith.constant 6 : index
    %c0_80 = arith.constant 0 : index
    %c0_81 = arith.constant 0 : index
    %153 = vector.load %arg10[%c6_79, %c0_80, %c0_81] : memref<9x16x256xf32, #tpu.memory_space<vmem>>, vector<1x16x256xf32>
    %154 = vector.shape_cast %153 : vector<1x16x256xf32> to vector<16x256xf32>
    %155 = arith.mulf %152, %154 : vector<16x256xf32>
    %156 = arith.addf %151, %155 : vector<16x256xf32>
    %c240_i32_82 = arith.constant 240 : i32
    %157 = tpu.dynamic_rotate %120 by %c240_i32_82 dim 1 : vector<16x256xf32>, i32 -> vector<16x256xf32>
    %c7_83 = arith.constant 7 : index
    %c0_84 = arith.constant 0 : index
    %c0_85 = arith.constant 0 : index
    %158 = vector.load %arg10[%c7_83, %c0_84, %c0_85] : memref<9x16x256xf32, #tpu.memory_space<vmem>>, vector<1x16x256xf32>
    %159 = vector.shape_cast %158 : vector<1x16x256xf32> to vector<16x256xf32>
    %160 = arith.mulf %157, %159 : vector<16x256xf32>
    %161 = arith.addf %156, %160 : vector<16x256xf32>
    %c239_i32_86 = arith.constant 239 : i32
    %162 = tpu.dynamic_rotate %120 by %c239_i32_86 dim 1 : vector<16x256xf32>, i32 -> vector<16x256xf32>
    %c8_87 = arith.constant 8 : index
    %c0_88 = arith.constant 0 : index
    %c0_89 = arith.constant 0 : index
    %163 = vector.load %arg10[%c8_87, %c0_88, %c0_89] : memref<9x16x256xf32, #tpu.memory_space<vmem>>, vector<1x16x256xf32>
    %164 = vector.shape_cast %163 : vector<1x16x256xf32> to vector<16x256xf32>
    %165 = arith.mulf %162, %164 : vector<16x256xf32>
    %166 = arith.addf %161, %165 : vector<16x256xf32>
    %c0_90 = arith.constant 0 : index
    %c0_91 = arith.constant 0 : index
    %167 = vector.load %arg11[%c0_90, %c0_91] : memref<16x1xf32, #tpu.memory_space<vmem>>, vector<16x1xf32>
    %168 = vector.broadcast %167 : vector<16x1xf32> to vector<16x256xf32>
    %169 = arith.addf %166, %168 : vector<16x256xf32>
    %cst_92 = arith.constant dense<0.000000e+00> : vector<16x256xf32>
    %170 = tpu.matmul %121, %169, %cst_92 {dimension_numbers = #tpu.dot_dimension_numbers<[1], [0], [0], [1], [0, 0, 1, 1], [], []>} : vector<16x16xf32>, vector<16x256xf32>, vector<16x256xf32> -> vector<16x256xf32>
    %cst_93 = arith.constant 0.000000e+00 : f32
    %171 = vector.broadcast %cst_93 : f32 to vector<16x256xf32>
    %172 = arith.cmpf oge, %170, %171 : vector<16x256xf32>
    %cst_94 = arith.constant 5.000000e-02 : f32
    %173 = vector.broadcast %cst_94 : f32 to vector<16x256xf32>
    %174 = arith.mulf %173, %170 : vector<16x256xf32>
    %175 = arith.select %172, %170, %174 : vector<16x256xi1>, vector<16x256xf32>
    %cst_95 = arith.constant dense<0.000000e+00> : vector<16xf32>
    %176 = vector.multi_reduction <add>, %175, %cst_95 [1] : vector<16x256xf32> to vector<16xf32>
    %177 = vector.shape_cast %176 : vector<16xf32> to vector<16x1xf32>
    %cst_96 = arith.constant 2.560000e+02 : f32
    %178 = vector.broadcast %cst_96 : f32 to vector<16x1xf32>
    %179 = arith.divf %177, %178 : vector<16x1xf32>
    %180 = vector.broadcast %179 : vector<16x1xf32> to vector<16x256xf32>
    %181 = arith.subf %175, %180 : vector<16x256xf32>
    %182 = arith.mulf %181, %181 : vector<16x256xf32>
    %cst_97 = arith.constant dense<0.000000e+00> : vector<16xf32>
    %183 = vector.multi_reduction <add>, %182, %cst_97 [1] : vector<16x256xf32> to vector<16xf32>
    %184 = vector.shape_cast %183 : vector<16xf32> to vector<16x1xf32>
    %cst_98 = arith.constant 2.560000e+02 : f32
    %185 = vector.broadcast %cst_98 : f32 to vector<16x1xf32>
    %186 = arith.divf %184, %185 : vector<16x1xf32>
    %187 = math.sqrt %186 : vector<16x1xf32>
    %188 = arith.addf %187, %179 : vector<16x1xf32>
    %c0_99 = arith.constant 0 : index
    %c0_100 = arith.constant 0 : index
    %189 = vector.load %arg13[%c0_99, %c0_100] : memref<16x1xf32, #tpu.memory_space<vmem>>, vector<16x1xf32>
    %190 = arith.mulf %189, %188 : vector<16x1xf32>
    %cst_101 = arith.constant dense<0.000000e+00> : vector<1xf32>
    %191 = vector.multi_reduction <add>, %190, %cst_101 [0] : vector<16x1xf32> to vector<1xf32>
    %192 = vector.shape_cast %191 : vector<1xf32> to vector<1x1xf32>
    %c0_102 = arith.constant 0 : index
    %c0_103 = arith.constant 0 : index
    %193 = vector.load %arg14[%c0_102, %c0_103] : memref<1x1xf32, #tpu.memory_space<vmem>>, vector<1x1xf32>
    %194 = arith.addf %192, %193 : vector<1x1xf32>
    %cst_104 = arith.constant 0.000000e+00 : f32
    %195 = vector.broadcast %cst_104 : f32 to vector<1x1xf32>
    %196 = arith.cmpf oge, %194, %195 : vector<1x1xf32>
    %cst_105 = arith.constant 5.000000e-02 : f32
    %197 = vector.broadcast %cst_105 : f32 to vector<1x1xf32>
    %198 = arith.mulf %197, %194 : vector<1x1xf32>
    %199 = arith.select %196, %194, %198 : vector<1x1xi1>, vector<1x1xf32>
    %c0_106 = arith.constant 0 : index
    %c0_107 = arith.constant 0 : index
    %200 = vector.load %arg15[%c0_106, %c0_107] : memref<16x1xf32, #tpu.memory_space<vmem>>, vector<16x1xf32>
    %201 = vector.broadcast %199 : vector<1x1xf32> to vector<16x1xf32>
    %202 = arith.mulf %200, %201 : vector<16x1xf32>
    %cst_108 = arith.constant dense<0.000000e+00> : vector<16xf32>
    %203 = vector.multi_reduction <add>, %202, %cst_108 [1] : vector<16x1xf32> to vector<16xf32>
    %204 = vector.shape_cast %203 : vector<16xf32> to vector<16x1xf32>
    %c0_109 = arith.constant 0 : index
    %c0_110 = arith.constant 0 : index
    %205 = vector.load %arg16[%c0_109, %c0_110] : memref<16x1xf32, #tpu.memory_space<vmem>>, vector<16x1xf32>
    %206 = arith.addf %204, %205 : vector<16x1xf32>
    %cst_111 = arith.constant 0.000000e+00 : f32
    %207 = vector.broadcast %cst_111 : f32 to vector<16x1xf32>
    %208 = arith.subf %207, %206 : vector<16x1xf32>
    %209 = math.exp %208 : vector<16x1xf32>
    %cst_112 = arith.constant 1.000000e+00 : f32
    %210 = vector.broadcast %cst_112 : f32 to vector<16x1xf32>
    %211 = arith.addf %210, %209 : vector<16x1xf32>
    %cst_113 = arith.constant 1.000000e+00 : f32
    %212 = vector.broadcast %cst_113 : f32 to vector<16x1xf32>
    %213 = arith.divf %212, %211 : vector<16x1xf32>
    %c0_114 = arith.constant 0 : index
    %c0_115 = arith.constant 0 : index
    %214 = vector.load %arg17[%c0_114, %c0_115] : memref<16x16xf32, #tpu.memory_space<vmem>>, vector<16x16xf32>
    %215 = vector.broadcast %213 : vector<16x1xf32> to vector<16x256xf32>
    %216 = arith.mulf %175, %215 : vector<16x256xf32>
    %cst_116 = arith.constant dense<0.000000e+00> : vector<16x256xf32>
    %217 = tpu.matmul %214, %216, %cst_116 {dimension_numbers = #tpu.dot_dimension_numbers<[1], [0], [0], [1], [0, 0, 1, 1], [], []>} : vector<16x16xf32>, vector<16x256xf32>, vector<16x256xf32> -> vector<16x256xf32>
    %c0_117 = arith.constant 0 : index
    %c0_118 = arith.constant 0 : index
    %218 = vector.load %arg18[%c0_117, %c0_118] : memref<16x1xf32, #tpu.memory_space<vmem>>, vector<16x1xf32>
    %219 = vector.broadcast %218 : vector<16x1xf32> to vector<16x256xf32>
    %220 = arith.addf %217, %219 : vector<16x256xf32>
    %221 = arith.addf %220, %1 : vector<16x256xf32>
    %222 = vector.shape_cast %221 : vector<16x256xf32> to vector<1x16x256xf32>
    %c0_119 = arith.constant 0 : index
    %c0_120 = arith.constant 0 : index
    %c0_121 = arith.constant 0 : index
    %223 = vector.load %arg19[%c0_119, %c0_120, %c0_121] : memref<1x16x256xf32, #tpu.memory_space<vmem>>, vector<1x16x256xf32>
    tpu.vector_store %arg19[%c0_119, %c0_120, %c0_121], %222 {strides = array<i32>} : memref<1x16x256xf32, #tpu.memory_space<vmem>>, vector<1x16x256xf32>,
    return
  }
  func.func @transform_0(%arg0: i32) -> (i32, i32, i32) {
    %c0_i32 = arith.constant 0 : i32
    %c0_i32_0 = arith.constant 0 : i32
    %c0_i32_1 = arith.constant 0 : i32
    return %arg0, %c0_i32, %c0_i32_0 : i32, i32, i32
  }
  func.func @transform_1(%arg0: i32) -> (i32, i32, i32) {
    %c0_i32 = arith.constant 0 : i32
    %c0_i32_0 = arith.constant 0 : i32
    %c0_i32_1 = arith.constant 0 : i32
    %c0_i32_2 = arith.constant 0 : i32
    return %c0_i32, %c0_i32_0, %c0_i32_1 : i32, i32, i32
  }
  func.func @transform_2(%arg0: i32) -> (i32, i32) {
    %c0_i32 = arith.constant 0 : i32
    %c0_i32_0 = arith.constant 0 : i32
    %c0_i32_1 = arith.constant 0 : i32
    return %c0_i32, %c0_i32_0 : i32, i32
  }
  func.func @transform_3(%arg0: i32) -> (i32, i32) {
    %c0_i32 = arith.constant 0 : i32
    %c0_i32_0 = arith.constant 0 : i32
    %c0_i32_1 = arith.constant 0 : i32
    return %c0_i32, %c0_i32_0 : i32, i32
  }
  func.func @transform_4(%arg0: i32) -> (i32, i32) {
    %c0_i32 = arith.constant 0 : i32
    %c0_i32_0 = arith.constant 0 : i32
    %c0_i32_1 = arith.constant 0 : i32
    return %c0_i32, %c0_i32_0 : i32, i32
  }
  func.func @transform_5(%arg0: i32) -> (i32, i32) {
    %c0_i32 = arith.constant 0 : i32
    %c0_i32_0 = arith.constant 0 : i32
    %c0_i32_1 = arith.constant 0 : i32
    return %c0_i32, %c0_i32_0 : i32, i32
  }
  func.func @transform_6(%arg0: i32) -> (i32, i32) {
    %c0_i32 = arith.constant 0 : i32
    %c0_i32_0 = arith.constant 0 : i32
    %c0_i32_1 = arith.constant 0 : i32
    return %c0_i32, %c0_i32_0 : i32, i32
  }
  func.func @transform_7(%arg0: i32) -> (i32, i32) {
    %c0_i32 = arith.constant 0 : i32
    %c0_i32_0 = arith.constant 0 : i32
    %c0_i32_1 = arith.constant 0 : i32
    return %c0_i32, %c0_i32_0 : i32, i32
  }
  func.func @transform_8(%arg0: i32) -> (i32, i32) {
    %c0_i32 = arith.constant 0 : i32
    %c0_i32_0 = arith.constant 0 : i32
    %c0_i32_1 = arith.constant 0 : i32
    return %c0_i32, %c0_i32_0 : i32, i32
  }
  func.func @transform_9(%arg0: i32) -> (i32, i32, i32) {
    %c0_i32 = arith.constant 0 : i32
    %c0_i32_0 = arith.constant 0 : i32
    %c0_i32_1 = arith.constant 0 : i32
    %c0_i32_2 = arith.constant 0 : i32
    return %c0_i32, %c0_i32_0, %c0_i32_1 : i32, i32, i32
  }
  func.func @transform_10(%arg0: i32) -> (i32, i32) {
    %c0_i32 = arith.constant 0 : i32
    %c0_i32_0 = arith.constant 0 : i32
    %c0_i32_1 = arith.constant 0 : i32
    return %c0_i32, %c0_i32_0 : i32, i32
  }
  func.func @transform_11(%arg0: i32) -> (i32, i32) {
    %c0_i32 = arith.constant 0 : i32
    %c0_i32_0 = arith.constant 0 : i32
    %c0_i32_1 = arith.constant 0 : i32
    return %c0_i32, %c0_i32_0 : i32, i32
  }
  func.func @transform_12(%arg0: i32) -> (i32, i32) {
    %c0_i32 = arith.constant 0 : i32
    %c0_i32_0 = arith.constant 0 : i32
    %c0_i32_1 = arith.constant 0 : i32
    return %c0_i32, %c0_i32_0 : i32, i32
  }
  func.func @transform_13(%arg0: i32) -> (i32, i32) {
    %c0_i32 = arith.constant 0 : i32
    %c0_i32_0 = arith.constant 0 : i32
    %c0_i32_1 = arith.constant 0 : i32
    return %c0_i32, %c0_i32_0 : i32, i32
  }
  func.func @transform_14(%arg0: i32) -> (i32, i32) {
    %c0_i32 = arith.constant 0 : i32
    %c0_i32_0 = arith.constant 0 : i32
    %c0_i32_1 = arith.constant 0 : i32
    return %c0_i32, %c0_i32_0 : i32, i32
  }
  func.func @transform_15(%arg0: i32) -> (i32, i32) {
    %c0_i32 = arith.constant 0 : i32
    %c0_i32_0 = arith.constant 0 : i32
    %c0_i32_1 = arith.constant 0 : i32
    return %c0_i32, %c0_i32_0 : i32, i32
  }
  func.func @transform_16(%arg0: i32) -> (i32, i32) {
    %c0_i32 = arith.constant 0 : i32
    %c0_i32_0 = arith.constant 0 : i32
    %c0_i32_1 = arith.constant 0 : i32
    return %c0_i32, %c0_i32_0 : i32, i32
  }
  func.func @transform_17(%arg0: i32) -> (i32, i32) {
    %c0_i32 = arith.constant 0 : i32
    %c0_i32_0 = arith.constant 0 : i32
    %c0_i32_1 = arith.constant 0 : i32
    return %c0_i32, %c0_i32_0 : i32, i32
  }
  func.func @transform_18(%arg0: i32) -> (i32, i32, i32) {
    %c0_i32 = arith.constant 0 : i32
    %c0_i32_0 = arith.constant 0 : i32
    %c0_i32_1 = arith.constant 0 : i32
    return %arg0, %c0_i32, %c0_i32_0 : i32, i32, i32
  }
}

</mosaic_0001>

<llo_original>
// kernel: squeeze.9
$region0: #{squeeze.9}
  %s0 = inlined_call_operand.vmem [shape: f32[16,3,3], index: 0, kind: input, shape index: {}]
  %s1 = inlined_call_operand.vmem [shape: f32[16,9], index: 1, kind: output, shape index: {}]
  $region1: #{squeeze.9} parent=0
    #allocation0 [shape = 'u8[12288]{0}', space=vmem, size = 0x3000, scoped, tag = 'scoped mem for input reshape']
    %s3 = sshllo.u32 0, 4
    %s4 = smul.addr 4, 2
    %s5 = scalar_lea.vmem %s0, %s4
    %v6 = vld [vmem:[%s5] sm:%s3]
    %s7 = scalar_lea.vmem [#allocation0], 16
    %8 = vst [vmem:[%s7] sm:%s3] %v6
    %s9 = scalar_lea.vmem %s0, 4
    %v10 = vld [vmem:[%s9] sm:%s3]
    %s11 = scalar_lea.vmem [#allocation0], 8
    %12 = vst [vmem:[%s11] sm:%s3] %v10
    %v13 = vld [vmem:[%s0] sm:%s3]
    %14 = vst [vmem:[#allocation0] sm:%s3] %v13
    %v15 = vld [vmem:[#allocation0] sm:$0x7]
    %vm16 = vcmask 130048
    %17 = vst.msk [vmem:[%s1] sm:$0x7] %vm16, %v15
    %s18 = scalar_lea.vmem [#allocation0], 8
    %v19 = vld [vmem:[%s18] sm:$0x7]
    %vm20 = vcmask 130048
    %s21 = scalar_lea.vmem %s1, 3
    %22 = vst.msk [vmem:[%s21] sm:$0x7] %vm20, %v19
    %s23 = scalar_lea.vmem [#allocation0], 16
    %v24 = vld [vmem:[%s23] sm:$0x7]
    %vm25 = vcmask 130048
    %s26 = scalar_lea.vmem %s1, 6
    %27 = vst.msk [vmem:[%s26] sm:$0x7] %vm25, %v24

// kernel: rlfb2_pallas.1
$region0: #{rlfb2_pallas.1}
  #allocation0 [shape = 'u32[]', space=smem, size = 0x4, offset = 0x4, fixed_abs, tag = 'smem constant byte address 0x4 - core index']
  #allocation1 [shape = 'u32[144,128]{1,0:T(1,128)}', space=vmem, size = 0x12000, scoped, tag = 'internal scratch']
  #allocation2 [shape = 'f32[1,1]{1,0:T(1,128)S(1)}', space=vmem, size = 0x200, scoped, tag = 'scoped memory for rlfb2_pallas.1']
  %s0 = inlined_call_operand.vmem [shape: f32[2,16,256], index: 0, kind: input, shape index: {}]
  %s1 = inlined_call_operand.vmem [shape: f32[9,16,256], index: 1, kind: input, shape index: {}]
  %s2 = inlined_call_operand.vmem [shape: f32[16,1], index: 2, kind: input, shape index: {}]
  %s3 = inlined_call_operand.vmem [shape: f32[16,16], index: 3, kind: input, shape index: {}]
  %s4 = inlined_call_operand.vmem [shape: f32[4,16], index: 4, kind: input, shape index: {}]
  %s5 = inlined_call_operand.vmem [shape: f32[4,1], index: 5, kind: input, shape index: {}]
  %s6 = inlined_call_operand.vmem [shape: f32[9,4], index: 6, kind: input, shape index: {}]
  %s7 = inlined_call_operand.vmem [shape: f32[9,1], index: 7, kind: input, shape index: {}]
  %s8 = inlined_call_operand.vmem [shape: f32[9,256], index: 8, kind: input, shape index: {}]
  %s9 = inlined_call_operand.vmem [shape: f32[9,16,256], index: 9, kind: input, shape index: {}]
  %s10 = inlined_call_operand.vmem [shape: f32[16,1], index: 10, kind: input, shape index: {}]
  %s11 = inlined_call_operand.vmem [shape: f32[16,16], index: 11, kind: input, shape index: {}]
  %s12 = inlined_call_operand.vmem [shape: f32[16,1], index: 12, kind: input, shape index: {}]
  %s13 = inlined_call_operand.<no memory space> [shape: f32[1,1], index: 13, kind: input, shape index: {}]
  %s14 = inlined_call_operand.vmem [shape: f32[16,1], index: 14, kind: input, shape index: {}]
  %s15 = inlined_call_operand.vmem [shape: f32[16,1], index: 15, kind: input, shape index: {}]
  %s16 = inlined_call_operand.vmem [shape: f32[16,16], index: 16, kind: input, shape index: {}]
  %s17 = inlined_call_operand.vmem [shape: f32[16,1], index: 17, kind: input, shape index: {}]
  %s18 = inlined_call_operand.vmem [shape: f32[2,16,256], index: 18, kind: output, shape index: {}]
  %s19 = sld [smem:[#allocation0]]
  $region105: #{rlfb2_pallas.1} parent=0
    _
  %s21 = ssub.s32 1, %s19
  %s22 = scalar_select 0, %s21, %s19
  %v23 = vstv %s13
  %24 = vst [vmem:[#allocation2] sm:$0x1] %v23
  loop: start=0, step=1, limit=4
  $region2: #{rlfb2_pallas.1} parent=0 // loop_pre_header
    _
  $region3: #{rlfb2_pallas.1} parent=0 // loop_header
    %s26 = sphi 0, %s30
    %p27 = scmp.ge.s32.totalorder %s26, 4
    %s36 = sphi 0, %s38
    %s39 = sphi 0, %s36
    %s40 = sphi 0, %s39
    %s56 = sphi 0, %s40
    %s60 = sphi 0, %s60
    %s62 = sphi 0, %s60
    %s63 = sphi 0, %s62
    %s77 = sphi 0, %s63
    %s81 = sphi 0, %s81
    %s83 = sphi 0, %s81
    %s84 = sphi 0, %s83
    %s98 = sphi 0, %s84
    %s102 = sphi 0, %s102
    %s104 = sphi 0, %s102
    %s105 = sphi 0, %s104
    %s119 = sphi 0, %s105
    %s123 = sphi 0, %s123
    %s125 = sphi 0, %s123
    %s126 = sphi 0, %s125
    %s140 = sphi 0, %s126
    %s144 = sphi 0, %s144
    %s146 = sphi 0, %s144
    %s147 = sphi 0, %s146
    %s161 = sphi 0, %s147
    %s165 = sphi 0, %s165
    %s167 = sphi 0, %s165
    %s168 = sphi 0, %s167
    %s182 = sphi 0, %s168
    %s186 = sphi 0, %s186
    %s188 = sphi 0, %s186
    %s189 = sphi 0, %s188
    %s203 = sphi 0, %s189
    %s207 = sphi 0, %s207
    %s209 = sphi 0, %s207
    %s210 = sphi 0, %s209
    %s224 = sphi 0, %s210
    %s228 = sphi 0, %s228
    %s230 = sphi 0, %s228
    %s231 = sphi 0, %s230
    %s245 = sphi 0, %s231
    %s249 = sphi 0, %s249
    %s251 = sphi 0, %s249
    %s252 = sphi 0, %s251
    %s266 = sphi 0, %s252
    %s270 = sphi 0, %s270
    %s272 = sphi 0, %s270
    %s273 = sphi 0, %s272
    %s287 = sphi 0, %s273
    %s291 = sphi 0, %s291
    %s293 = sphi 0, %s291
    %s294 = sphi 0, %s293
    %s308 = sphi 0, %s294
    %s312 = sphi 0, %s312
    %s314 = sphi 0, %s312
    %s315 = sphi 0, %s314
    %s329 = sphi 0, %s315
    %s333 = sphi 0, %s333
    %s335 = sphi 0, %s333
    %s336 = sphi 0, %s335
    %s350 = sphi 0, %s336
    %s354 = sphi 0, %s354
    %s356 = sphi 0, %s354
    %s357 = sphi 0, %s356
    %s371 = sphi 0, %s357
    %s375 = sphi 0, %s375
    %s377 = sphi 0, %s375
    %s378 = sphi 0, %s377
    %s392 = sphi 0, %s378
    %s396 = sphi 0, %s396
    %s398 = sphi 0, %s396
    %s399 = sphi 0, %s398
    %s413 = sphi 0, %s399
    %s419 = sphi 0, %s421
    %s422 = sphi 0, %s419
    %s423 = sphi 0, %s422
    %s439 = sphi 0, %s423
  $region4: #{rlfb2_pallas.1} parent=0 // loop_header_branch
    %29 = sbr.rel (%p27) target = $region8
  $region5: #{rlfb2_pallas.1} parent=0 // loop_body
    %s31 = ssub.s32 %s26, 1
    %s32 = ssub.s32 %s26, 2
    %s33 = sadd.s32 %s26, 1
    %s34 = ssub.s32 %s26, %s33
    %p35 = scmp.eq.s32.totalorder %s34, 0
    %s37 = sadd.s32 %s36, 1
    %s38 = scalar_select %p35, %s36, %s37
    %p41 = pneg %p35
    %p42 = scmp.eq.s32.totalorder %s26, 1
    %p43 = por %p41, %p42
    %p44 = scmp.ne.s32.totalorder %s36, %s39
    %p45 = scmp.eq.s32.totalorder %s26, 0
    %p46 = por %p44, %p45
    %p47 = scmp.ne.s32.totalorder %s36, %s39
    %p48 = scmp.eq.s32.totalorder %s31, 1
    %p49 = por %p47, %p48
    %p50 = scmp.ne.s32.totalorder %s39, %s40
    %p51 = scmp.eq.s32.totalorder %s31, 0
    %p52 = por %p50, %p51
    %p53 = scmp.ne.s32.totalorder %s39, %s40
    %p54 = scmp.eq.s32.totalorder %s32, 1
    %p55 = por %p53, %p54
    %p57 = scmp.ne.s32.totalorder %s40, %s56
    %p58 = scmp.eq.s32.totalorder %s32, 0
    %p59 = por %p57, %p58
    %s61 = sadd.s32 %s60, 1
    %p64 = scmp.eq.s32.totalorder %s26, 1
    %p65 = scmp.ne.s32.totalorder %s60, %s62
    %p66 = scmp.eq.s32.totalorder %s26, 0
    %p67 = por %p65, %p66
    %p68 = scmp.ne.s32.totalorder %s60, %s62
    %p69 = scmp.eq.s32.totalorder %s31, 1
    %p70 = por %p68, %p69
    %p71 = scmp.ne.s32.totalorder %s62, %s63
    %p72 = scmp.eq.s32.totalorder %s31, 0
    %p73 = por %p71, %p72
    %p74 = scmp.ne.s32.totalorder %s62, %s63
    %p75 = scmp.eq.s32.totalorder %s32, 1
    %p76 = por %p74, %p75
    %p78 = scmp.ne.s32.totalorder %s63, %s77
    %p79 = scmp.eq.s32.totalorder %s32, 0
    %p80 = por %p78, %p79
    %s82 = sadd.s32 %s81, 1
    %p85 = scmp.eq.s32.totalorder %s26, 1
    %p86 = scmp.ne.s32.totalorder %s81, %s83
    %p87 = scmp.eq.s32.totalorder %s26, 0
    %p88 = por %p86, %p87
    %p89 = scmp.ne.s32.totalorder %s81, %s83
    %p90 = scmp.eq.s32.totalorder %s31, 1
    %p91 = por %p89, %p90
    %p92 = scmp.ne.s32.totalorder %s83, %s84
    %p93 = scmp.eq.s32.totalorder %s31, 0
    %p94 = por %p92, %p93
    %p95 = scmp.ne.s32.totalorder %s83, %s84
    %p96 = scmp.eq.s32.totalorder %s32, 1
    %p97 = por %p95, %p96
    %p99 = scmp.ne.s32.totalorder %s84, %s98
    %p100 = scmp.eq.s32.totalorder %s32, 0
    %p101 = por %p99, %p100
    %s103 = sadd.s32 %s102, 1
    %p106 = scmp.eq.s32.totalorder %s26, 1
    %p107 = scmp.ne.s32.totalorder %s102, %s104
    %p108 = scmp.eq.s32.totalorder %s26, 0
    %p109 = por %p107, %p108
    %p110 = scmp.ne.s32.totalorder %s102, %s104
    %p111 = scmp.eq.s32.totalorder %s31, 1
    %p112 = por %p110, %p111
    %p113 = scmp.ne.s32.totalorder %s104, %s105
    %p114 = scmp.eq.s32.totalorder %s31, 0
    %p115 = por %p113, %p114
    %p116 = scmp.ne.s32.totalorder %s104, %s105
    %p117 = scmp.eq.s32.totalorder %s32, 1
    %p118 = por %p116, %p117
    %p120 = scmp.ne.s32.totalorder %s105, %s119
    %p121 = scmp.eq.s32.totalorder %s32, 0
    %p122 = por %p120, %p121
    %s124 = sadd.s32 %s123, 1
    %p127 = scmp.eq.s32.totalorder %s26, 1
    %p128 = scmp.ne.s32.totalorder %s123, %s125
    %p129 = scmp.eq.s32.totalorder %s26, 0
    %p130 = por %p128, %p129
    %p131 = scmp.ne.s32.totalorder %s123, %s125
    %p132 = scmp.eq.s32.totalorder %s31, 1
    %p133 = por %p131, %p132
    %p134 = scmp.ne.s32.totalorder %s125, %s126
    %p135 = scmp.eq.s32.totalorder %s31, 0
    %p136 = por %p134, %p135
    %p137 = scmp.ne.s32.totalorder %s125, %s126
    %p138 = scmp.eq.s32.totalorder %s32, 1
    %p139 = por %p137, %p138
    %p141 = scmp.ne.s32.totalorder %s126, %s140
    %p142 = scmp.eq.s32.totalorder %s32, 0
    %p143 = por %p141, %p142
    %s145 = sadd.s32 %s144, 1
    %p148 = scmp.eq.s32.totalorder %s26, 1
    %p149 = scmp.ne.s32.totalorder %s144, %s146
    %p150 = scmp.eq.s32.totalorder %s26, 0
    %p151 = por %p149, %p150
    %p152 = scmp.ne.s32.totalorder %s144, %s146
    %p153 = scmp.eq.s32.totalorder %s31, 1
    %p154 = por %p152, %p153
    %p155 = scmp.ne.s32.totalorder %s146, %s147
    %p156 = scmp.eq.s32.totalorder %s31, 0
    %p157 = por %p155, %p156
    %p158 = scmp.ne.s32.totalorder %s146, %s147
    %p159 = scmp.eq.s32.totalorder %s32, 1
    %p160 = por %p158, %p159
    %p162 = scmp.ne.s32.totalorder %s147, %s161
    %p163 = scmp.eq.s32.totalorder %s32, 0
    %p164 = por %p162, %p163
    %s166 = sadd.s32 %s165, 1
    %p169 = scmp.eq.s32.totalorder %s26, 1
    %p170 = scmp.ne.s32.totalorder %s165, %s167
    %p171 = scmp.eq.s32.totalorder %s26, 0
    %p172 = por %p170, %p171
    %p173 = scmp.ne.s32.totalorder %s165, %s167
    %p174 = scmp.eq.s32.totalorder %s31, 1
    %p175 = por %p173, %p174
    %p176 = scmp.ne.s32.totalorder %s167, %s168
    %p177 = scmp.eq.s32.totalorder %s31, 0
    %p178 = por %p176, %p177
    %p179 = scmp.ne.s32.totalorder %s167, %s168
    %p180 = scmp.eq.s32.totalorder %s32, 1
    %p181 = por %p179, %p180
    %p183 = scmp.ne.s32.totalorder %s168, %s182
    %p184 = scmp.eq.s32.totalorder %s32, 0
    %p185 = por %p183, %p184
    %s187 = sadd.s32 %s186, 1
    %p190 = scmp.eq.s32.totalorder %s26, 1
    %p191 = scmp.ne.s32.totalorder %s186, %s188
    %p192 = scmp.eq.s32.totalorder %s26, 0
    %p193 = por %p191, %p192
    %p194 = scmp.ne.s32.totalorder %s186, %s188
    %p195 = scmp.eq.s32.totalorder %s31, 1
    %p196 = por %p194, %p195
    %p197 = scmp.ne.s32.totalorder %s188, %s189
    %p198 = scmp.eq.s32.totalorder %s31, 0
    %p199 = por %p197, %p198
    %p200 = scmp.ne.s32.totalorder %s188, %s189
    %p201 = scmp.eq.s32.totalorder %s32, 1
    %p202 = por %p200, %p201
    %p204 = scmp.ne.s32.totalorder %s189, %s203
    %p205 = scmp.eq.s32.totalorder %s32, 0
    %p206 = por %p204, %p205
    %s208 = sadd.s32 %s207, 1
    %p211 = scmp.eq.s32.totalorder %s26, 1
    %p212 = scmp.ne.s32.totalorder %s207, %s209
    %p213 = scmp.eq.s32.totalorder %s26, 0
    %p214 = por %p212, %p213
    %p215 = scmp.ne.s32.totalorder %s207, %s209
    %p216 = scmp.eq.s32.totalorder %s31, 1
    %p217 = por %p215, %p216
    %p218 = scmp.ne.s32.totalorder %s209, %s210
    %p219 = scmp.eq.s32.totalorder %s31, 0
    %p220 = por %p218, %p219
    %p221 = scmp.ne.s32.totalorder %s209, %s210
    %p222 = scmp.eq.s32.totalorder %s32, 1
    %p223 = por %p221, %p222
    %p225 = scmp.ne.s32.totalorder %s210, %s224
    %p226 = scmp.eq.s32.totalorder %s32, 0
    %p227 = por %p225, %p226
    %s229 = sadd.s32 %s228, 1
    %p232 = scmp.eq.s32.totalorder %s26, 1
    %p233 = scmp.ne.s32.totalorder %s228, %s230
    %p234 = scmp.eq.s32.totalorder %s26, 0
    %p235 = por %p233, %p234
    %p236 = scmp.ne.s32.totalorder %s228, %s230
    %p237 = scmp.eq.s32.totalorder %s31, 1
    %p238 = por %p236, %p237
    %p239 = scmp.ne.s32.totalorder %s230, %s231
    %p240 = scmp.eq.s32.totalorder %s31, 0
    %p241 = por %p239, %p240
    %p242 = scmp.ne.s32.totalorder %s230, %s231
    %p243 = scmp.eq.s32.totalorder %s32, 1
    %p244 = por %p242, %p243
    %p246 = scmp.ne.s32.totalorder %s231, %s245
    %p247 = scmp.eq.s32.totalorder %s32, 0
    %p248 = por %p246, %p247
    %s250 = sadd.s32 %s249, 1
    %p253 = scmp.eq.s32.totalorder %s26, 1
    %p254 = scmp.ne.s32.totalorder %s249, %s251
    %p255 = scmp.eq.s32.totalorder %s26, 0
    %p256 = por %p254, %p255
    %p257 = scmp.ne.s32.totalorder %s249, %s251
    %p258 = scmp.eq.s32.totalorder %s31, 1
    %p259 = por %p257, %p258
    %p260 = scmp.ne.s32.totalorder %s251, %s252
    %p261 = scmp.eq.s32.totalorder %s31, 0
    %p262 = por %p260, %p261
    %p263 = scmp.ne.s32.totalorder %s251, %s252
    %p264 = scmp.eq.s32.totalorder %s32, 1
    %p265 = por %p263, %p264
    %p267 = scmp.ne.s32.totalorder %s252, %s266
    %p268 = scmp.eq.s32.totalorder %s32, 0
    %p269 = por %p267, %p268
    %s271 = sadd.s32 %s270, 1
    %p274 = scmp.eq.s32.totalorder %s26, 1
    %p275 = scmp.ne.s32.totalorder %s270, %s272
    %p276 = scmp.eq.s32.totalorder %s26, 0
    %p277 = por %p275, %p276
    %p278 = scmp.ne.s32.totalorder %s270, %s272
    %p279 = scmp.eq.s32.totalorder %s31, 1
    %p280 = por %p278, %p279
    %p281 = scmp.ne.s32.totalorder %s272, %s273
    %p282 = scmp.eq.s32.totalorder %s31, 0
    %p283 = por %p281, %p282
    %p284 = scmp.ne.s32.totalorder %s272, %s273
    %p285 = scmp.eq.s32.totalorder %s32, 1
    %p286 = por %p284, %p285
    %p288 = scmp.ne.s32.totalorder %s273, %s287
    %p289 = scmp.eq.s32.totalorder %s32, 0
    %p290 = por %p288, %p289
    %s292 = sadd.s32 %s291, 1
    %p295 = scmp.eq.s32.totalorder %s26, 1
    %p296 = scmp.ne.s32.totalorder %s291, %s293
    %p297 = scmp.eq.s32.totalorder %s26, 0
    %p298 = por %p296, %p297
    %p299 = scmp.ne.s32.totalorder %s291, %s293
    %p300 = scmp.eq.s32.totalorder %s31, 1
    %p301 = por %p299, %p300
    %p302 = scmp.ne.s32.totalorder %s293, %s294
    %p303 = scmp.eq.s32.totalorder %s31, 0
    %p304 = por %p302, %p303
    %p305 = scmp.ne.s32.totalorder %s293, %s294
    %p306 = scmp.eq.s32.totalorder %s32, 1
    %p307 = por %p305, %p306
    %p309 = scmp.ne.s32.totalorder %s294, %s308
    %p310 = scmp.eq.s32.totalorder %s32, 0
    %p311 = por %p309, %p310
    %s313 = sadd.s32 %s312, 1
    %p316 = scmp.eq.s32.totalorder %s26, 1
    %p317 = scmp.ne.s32.totalorder %s312, %s314
    %p318 = scmp.eq.s32.totalorder %s26, 0
    %p319 = por %p317, %p318
    %p320 = scmp.ne.s32.totalorder %s312, %s314
    %p321 = scmp.eq.s32.totalorder %s31, 1
    %p322 = por %p320, %p321
    %p323 = scmp.ne.s32.totalorder %s314, %s315
    %p324 = scmp.eq.s32.totalorder %s31, 0
    %p325 = por %p323, %p324
    %p326 = scmp.ne.s32.totalorder %s314, %s315
    %p327 = scmp.eq.s32.totalorder %s32, 1
    %p328 = por %p326, %p327
    %p330 = scmp.ne.s32.totalorder %s315, %s329
    %p331 = scmp.eq.s32.totalorder %s32, 0
    %p332 = por %p330, %p331
    %s334 = sadd.s32 %s333, 1
    %p337 = scmp.eq.s32.totalorder %s26, 1
    %p338 = scmp.ne.s32.totalorder %s333, %s335
    %p339 = scmp.eq.s32.totalorder %s26, 0
    %p340 = por %p338, %p339
    %p341 = scmp.ne.s32.totalorder %s333, %s335
    %p342 = scmp.eq.s32.totalorder %s31, 1
    %p343 = por %p341, %p342
    %p344 = scmp.ne.s32.totalorder %s335, %s336
    %p345 = scmp.eq.s32.totalorder %s31, 0
    %p346 = por %p344, %p345
    %p347 = scmp.ne.s32.totalorder %s335, %s336
    %p348 = scmp.eq.s32.totalorder %s32, 1
    %p349 = por %p347, %p348
    %p351 = scmp.ne.s32.totalorder %s336, %s350
    %p352 = scmp.eq.s32.totalorder %s32, 0
    %p353 = por %p351, %p352
    %s355 = sadd.s32 %s354, 1
    %p358 = scmp.eq.s32.totalorder %s26, 1
    %p359 = scmp.ne.s32.totalorder %s354, %s356
    %p360 = scmp.eq.s32.totalorder %s26, 0
    %p361 = por %p359, %p360
    %p362 = scmp.ne.s32.totalorder %s354, %s356
    %p363 = scmp.eq.s32.totalorder %s31, 1
    %p364 = por %p362, %p363
    %p365 = scmp.ne.s32.totalorder %s356, %s357
    %p366 = scmp.eq.s32.totalorder %s31, 0
    %p367 = por %p365, %p366
    %p368 = scmp.ne.s32.totalorder %s356, %s357
    %p369 = scmp.eq.s32.totalorder %s32, 1
    %p370 = por %p368, %p369
    %p372 = scmp.ne.s32.totalorder %s357, %s371
    %p373 = scmp.eq.s32.totalorder %s32, 0
    %p374 = por %p372, %p373
    %s376 = sadd.s32 %s375, 1
    %p379 = scmp.eq.s32.totalorder %s26, 1
    %p380 = scmp.ne.s32.totalorder %s375, %s377
    %p381 = scmp.eq.s32.totalorder %s26, 0
    %p382 = por %p380, %p381
    %p383 = scmp.ne.s32.totalorder %s375, %s377
    %p384 = scmp.eq.s32.totalorder %s31, 1
    %p385 = por %p383, %p384
    %p386 = scmp.ne.s32.totalorder %s377, %s378
    %p387 = scmp.eq.s32.totalorder %s31, 0
    %p388 = por %p386, %p387
    %p389 = scmp.ne.s32.totalorder %s377, %s378
    %p390 = scmp.eq.s32.totalorder %s32, 1
    %p391 = por %p389, %p390
    %p393 = scmp.ne.s32.totalorder %s378, %s392
    %p394 = scmp.eq.s32.totalorder %s32, 0
    %p395 = por %p393, %p394
    %s397 = sadd.s32 %s396, 1
    %p400 = scmp.eq.s32.totalorder %s26, 1
    %p401 = scmp.ne.s32.totalorder %s396, %s398
    %p402 = scmp.eq.s32.totalorder %s26, 0
    %p403 = por %p401, %p402
    %p404 = scmp.ne.s32.totalorder %s396, %s398
    %p405 = scmp.eq.s32.totalorder %s31, 1
    %p406 = por %p404, %p405
    %p407 = scmp.ne.s32.totalorder %s398, %s399
    %p408 = scmp.eq.s32.totalorder %s31, 0
    %p409 = por %p407, %p408
    %p410 = scmp.ne.s32.totalorder %s398, %s399
    %p411 = scmp.eq.s32.totalorder %s32, 1
    %p412 = por %p410, %p411
    %p414 = scmp.ne.s32.totalorder %s399, %s413
    %p415 = scmp.eq.s32.totalorder %s32, 0
    %p416 = por %p414, %p415
    %s417 = ssub.s32 %s26, %s33
    %p418 = scmp.eq.s32.totalorder %s417, 0
    %s420 = sadd.s32 %s419, 1
    %s421 = scalar_select %p418, %s419, %s420
    %p424 = pneg %p418
    %p425 = scmp.eq.s32.totalorder %s26, 1
    %p426 = por %p424, %p425
    %p427 = scmp.ne.s32.totalorder %s419, %s422
    %p428 = scmp.eq.s32.totalorder %s26, 0
    %p429 = por %p427, %p428
    %p430 = scmp.ne.s32.totalorder %s419, %s422
    %p431 = scmp.eq.s32.totalorder %s31, 1
    %p432 = por %p430, %p431
    %p433 = scmp.ne.s32.totalorder %s422, %s423
    %p434 = scmp.eq.s32.totalorder %s31, 0
    %p435 = por %p433, %p434
    %p436 = scmp.ne.s32.totalorder %s422, %s423
    %p437 = scmp.eq.s32.totalorder %s32, 1
    %p438 = por %p436, %p437
    %p440 = scmp.ne.s32.totalorder %s423, %s439
    %p441 = scmp.eq.s32.totalorder %s32, 0
    %p442 = por %p440, %p441
    %p443 = scmp.le.s32.totalorder 1, %s26
    %p444 = scmp.lt.s32.totalorder %s26, 3
    %p445 = pnand %p443, %p444
    %p446 = pneg %p445
    // Predicated region
    $region9: #{rlfb2_pallas.1} parent=5 // pred_check
      _
    $region10: #{rlfb2_pallas.1} parent=5 // pred_check_branch
      %448 = sbr.rel (%p445) target = $region12
    $region11: #{rlfb2_pallas.1} parent=5 // pred_region
      %s449 = ssub.s32 %s26, 1
      // Predicated region
      $region13: #{rlfb2_pallas.1} parent=11 // pred_check
        %p450 = pneg %p73
      $region14: #{rlfb2_pallas.1} parent=11 // pred_check_branch
        %452 = sbr.rel (%p450) target = $region16
      $region15: #{rlfb2_pallas.1} parent=11 // pred_region
        _
      $region16: #{rlfb2_pallas.1} parent=11 // pred_fallthru
        _
      // Predicated region
      $region17: #{rlfb2_pallas.1} parent=11 // pred_check
        %p453 = pneg %p94
      $region18: #{rlfb2_pallas.1} parent=11 // pred_check_branch
        %455 = sbr.rel (%p453) target = $region20
      $region19: #{rlfb2_pallas.1} parent=11 // pred_region
        _
      $region20: #{rlfb2_pallas.1} parent=11 // pred_fallthru
        _
      // Predicated region
      $region21: #{rlfb2_pallas.1} parent=11 // pred_check
        %p456 = pneg %p115
      $region22: #{rlfb2_pallas.1} parent=11 // pred_check_branch
        %458 = sbr.rel (%p456) target = $region24
      $region23: #{rlfb2_pallas.1} parent=11 // pred_region
        _
      $region24: #{rlfb2_pallas.1} parent=11 // pred_fallthru
        _
      // Predicated region
      $region25: #{rlfb2_pallas.1} parent=11 // pred_check
        %p459 = pneg %p136
      $region26: #{rlfb2_pallas.1} parent=11 // pred_check_branch
        %461 = sbr.rel (%p459) target = $region28
      $region27: #{rlfb2_pallas.1} parent=11 // pred_region
        _
      $region28: #{rlfb2_pallas.1} parent=11 // pred_fallthru
        _
      // Predicated region
      $region29: #{rlfb2_pallas.1} parent=11 // pred_check
        %p462 = pneg %p157
      $region30: #{rlfb2_pallas.1} parent=11 // pred_check_branch
        %464 = sbr.rel (%p462) target = $region32
      $region31: #{rlfb2_pallas.1} parent=11 // pred_region
        _
      $region32: #{rlfb2_pallas.1} parent=11 // pred_fallthru
        _
      // Predicated region
      $region33: #{rlfb2_pallas.1} parent=11 // pred_check
        %p465 = pneg %p178
      $region34: #{rlfb2_pallas.1} parent=11 // pred_check_branch
        %467 = sbr.rel (%p465) target = $region36
      $region35: #{rlfb2_pallas.1} parent=11 // pred_region
        _
      $region36: #{rlfb2_pallas.1} parent=11 // pred_fallthru
        _
      // Predicated region
      $region37: #{rlfb2_pallas.1} parent=11 // pred_check
        %p468 = pneg %p199
      $region38: #{rlfb2_pallas.1} parent=11 // pred_check_branch
        %470 = sbr.rel (%p468) target = $region40
      $region39: #{rlfb2_pallas.1} parent=11 // pred_region
        _
      $region40: #{rlfb2_pallas.1} parent=11 // pred_fallthru
        _
      // Predicated region
      $region41: #{rlfb2_pallas.1} parent=11 // pred_check
        %p471 = pneg %p220
      $region42: #{rlfb2_pallas.1} parent=11 // pred_check_branch
        %473 = sbr.rel (%p471) target = $region44
      $region43: #{rlfb2_pallas.1} parent=11 // pred_region
        _
      $region44: #{rlfb2_pallas.1} parent=11 // pred_fallthru
        _
      // Predicated region
      $region45: #{rlfb2_pallas.1} parent=11 // pred_check
        %p474 = pneg %p241
      $region46: #{rlfb2_pallas.1} parent=11 // pred_check_branch
        %476 = sbr.rel (%p474) target = $region48
      $region47: #{rlfb2_pallas.1} parent=11 // pred_region
        _
      $region48: #{rlfb2_pallas.1} parent=11 // pred_fallthru
        _
      // Predicated region
      $region49: #{rlfb2_pallas.1} parent=11 // pred_check
        %p477 = pneg %p262
      $region50: #{rlfb2_pallas.1} parent=11 // pred_check_branch
        %479 = sbr.rel (%p477) target = $region52
      $region51: #{rlfb2_pallas.1} parent=11 // pred_region
        _
      $region52: #{rlfb2_pallas.1} parent=11 // pred_fallthru
        _
      // Predicated region
      $region53: #{rlfb2_pallas.1} parent=11 // pred_check
        %p480 = pneg %p283
      $region54: #{rlfb2_pallas.1} parent=11 // pred_check_branch
        %482 = sbr.rel (%p480) target = $region56
      $region55: #{rlfb2_pallas.1} parent=11 // pred_region
        _
      $region56: #{rlfb2_pallas.1} parent=11 // pred_fallthru
        _
      // Predicated region
      $region57: #{rlfb2_pallas.1} parent=11 // pred_check
        %p483 = pneg %p304
      $region58: #{rlfb2_pallas.1} parent=11 // pred_check_branch
        %485 = sbr.rel (%p483) target = $region60
      $region59: #{rlfb2_pallas.1} parent=11 // pred_region
        _
      $region60: #{rlfb2_pallas.1} parent=11 // pred_fallthru
        _
      // Predicated region
      $region61: #{rlfb2_pallas.1} parent=11 // pred_check
        %p486 = pneg %p325
      $region62: #{rlfb2_pallas.1} parent=11 // pred_check_branch
        %488 = sbr.rel (%p486) target = $region64
      $region63: #{rlfb2_pallas.1} parent=11 // pred_region
        _
      $region64: #{rlfb2_pallas.1} parent=11 // pred_fallthru
        _
      // Predicated region
      $region65: #{rlfb2_pallas.1} parent=11 // pred_check
        %p489 = pneg %p346
      $region66: #{rlfb2_pallas.1} parent=11 // pred_check_branch
        %491 = sbr.rel (%p489) target = $region68
      $region67: #{rlfb2_pallas.1} parent=11 // pred_region
        _
      $region68: #{rlfb2_pallas.1} parent=11 // pred_fallthru
        _
      // Predicated region
      $region69: #{rlfb2_pallas.1} parent=11 // pred_check
        %p492 = pneg %p367
      $region70: #{rlfb2_pallas.1} parent=11 // pred_check_branch
        %494 = sbr.rel (%p492) target = $region72
      $region71: #{rlfb2_pallas.1} parent=11 // pred_region
        _
      $region72: #{rlfb2_pallas.1} parent=11 // pred_fallthru
        _
      // Predicated region
      $region73: #{rlfb2_pallas.1} parent=11 // pred_check
        %p495 = pneg %p388
      $region74: #{rlfb2_pallas.1} parent=11 // pred_check_branch
        %497 = sbr.rel (%p495) target = $region76
      $region75: #{rlfb2_pallas.1} parent=11 // pred_region
        _
      $region76: #{rlfb2_pallas.1} parent=11 // pred_fallthru
        _
      // Predicated region
      $region77: #{rlfb2_pallas.1} parent=11 // pred_check
        %p498 = pneg %p409
      $region78: #{rlfb2_pallas.1} parent=11 // pred_check_branch
        %500 = sbr.rel (%p498) target = $region80
      $region79: #{rlfb2_pallas.1} parent=11 // pred_region
        _
      $region80: #{rlfb2_pallas.1} parent=11 // pred_fallthru
        _
    $region12: #{rlfb2_pallas.1} parent=5 // pred_fallthru
      _
    %p501 = scmp.lt.s32.totalorder %s26, 2
    // Predicated region
    $region81: #{rlfb2_pallas.1} parent=5 // pred_check
      %p502 = pneg %p501
    $region82: #{rlfb2_pallas.1} parent=5 // pred_check_branch
      %504 = sbr.rel (%p502) target = $region84
    $region83: #{rlfb2_pallas.1} parent=5 // pred_region
      // Predicated region
      $region85: #{rlfb2_pallas.1} parent=83 // pred_check
        %p505 = pneg %p46
      $region86: #{rlfb2_pallas.1} parent=83 // pred_check_branch
        %507 = sbr.rel (%p505) target = $region88
      $region87: #{rlfb2_pallas.1} parent=83 // pred_region
        %p508 = scmp.lt.s32.totalorder %s26, 1
        %s509 = scalar_select %p508, %s26, 1
        %s510 = smul.addr %s509, 4
        %s511 = smul.addr %s510, 8
        %s512 = scalar_lea.vmem %s0, %s511
      $region88: #{rlfb2_pallas.1} parent=83 // pred_fallthru
        _
    $region84: #{rlfb2_pallas.1} parent=5 // pred_fallthru
      _
    %p513 = scmp.le.s32.totalorder 1, %s26
    %p514 = scmp.lt.s32.totalorder %s26, 3
    %p515 = pnand %p513, %p514
    %p516 = pneg %p515
    // Predicated region
    $region89: #{rlfb2_pallas.1} parent=5 // pred_check
      _
    $region90: #{rlfb2_pallas.1} parent=5 // pred_check_branch
      %518 = sbr.rel (%p515) target = $region92
    $region91: #{rlfb2_pallas.1} parent=5 // pred_region
      %s519 = ssub.s32 %s26, 1
      %p520 = scmp.lt.s32.totalorder %s31, 1
      %s521 = scalar_select %p520, %s31, 1
      %s522 = smul.addr %s521, 4
      %s523 = smul.addr %s522, 8
      %s524 = scalar_lea.vmem %s0, %s523
      %p525 = pneg %p52
      %p526 = pneg %p49
      %p527 = pneg %p73
      %p528 = pneg %p70
      %p529 = pneg %p94
      %p530 = pneg %p91
      %p531 = pneg %p115
      %p532 = pneg %p112
      %p533 = pneg %p136
      %p534 = pneg %p133
      %p535 = pneg %p157
      %p536 = pneg %p154
      %p537 = pneg %p178
      %p538 = pneg %p175
      %p539 = pneg %p199
      %p540 = pneg %p196
      %p541 = pneg %p220
      %p542 = pneg %p217
      %p543 = pneg %p241
      %p544 = pneg %p238
      %p545 = pneg %p262
      %p546 = pneg %p259
      %p547 = pneg %p283
      %p548 = pneg %p280
      %p549 = pneg %p304
      %p550 = pneg %p301
      %p551 = pneg %p325
      %p552 = pneg %p322
      %p553 = pneg %p346
      %p554 = pneg %p343
      %p555 = pneg %p367
      %p556 = pneg %p364
      %p557 = pneg %p388
      %p558 = pneg %p385
      %p559 = pneg %p409
      %p560 = pneg %p406
      %p561 = pneg %p435
      %p562 = pneg %p432
      %p563 = scmp.lt.s32.totalorder %s31, 1
      %s564 = scalar_select %p563, %s31, 1
      %s565 = smul.addr %s564, 4
      %s566 = smul.addr %s565, 8
      %s567 = scalar_lea.vmem %s18, %s566
      %p568 = scmp.lt.s32.totalorder %s31, 1
      %s569 = scalar_select %p568, %s31, 1
      %s570 = smul.addr %s569, 4
      %s571 = smul.addr %s570, 8
      %s572 = scalar_lea.vmem %s0, %s571
      %p573 = scmp.lt.s32.totalorder %s31, 1
      %s574 = scalar_select %p573, %s31, 1
      %s575 = smul.addr %s574, 4
      %s576 = smul.addr %s575, 8
      %s577 = scalar_lea.vmem %s18, %s576
      %v578 = vld [vmem:[%s572] sm:$0xff]
      %v579 = vld [vmem:[%s572 + $0x8] sm:$0xff]
      %v580 = vld [vmem:[%s572 + $0x10] sm:$0xff]
      %v581 = vld [vmem:[%s572 + $0x18] sm:$0xff]
      %v582 = vld [vmem:[%s3] sm:$0xff]
      %v583 = vld [vmem:[%s3 + $0x8] sm:$0xff]
      %584 = vrot.lane.b32.xlu0 %v578, 17
      %v585 = vpop.permute.xlu0 %584
      %586 = vrot.lane.b32.xlu0 %v580, 17
      %v587 = vpop.permute.xlu0 %586
      %588 = vrot.lane.b32.xlu0 %v579, 17
      %v589 = vpop.permute.xlu0 %588
      %590 = vrot.lane.b32.xlu0 %v581, 17
      %v591 = vpop.permute.xlu0 %590
      %v592 = vlaneseq
      %v593 = vand.u32 %v592, 127
      %vm594 = vcmp.lt.s32.totalorder %v593, 17
      %v595 = vsel %vm594, %v585, %v589
      %v596 = vsel %vm594, %v587, %v591
      %v597 = vsel %vm594, %v589, %v585
      %v598 = vsel %vm594, %v591, %v587
      %v599 = vld [vmem:[%s1] sm:$0xff]
      %v600 = vld [vmem:[%s1 + $0x8] sm:$0xff]
      %v601 = vld [vmem:[%s1 + $0x10] sm:$0xff]
      %v602 = vld [vmem:[%s1 + $0x18] sm:$0xff]
      %v603 = vmul.f32 %v597, %v599
      %v604 = vmul.f32 %v595, %v600
      %v605 = vmul.f32 %v598, %v601
      %v606 = vmul.f32 %v596, %v602
      %v607 = vadd.f32 %v603, 0.0
      %v608 = vadd.f32 %v604, 0.0
      %v609 = vadd.f32 %v605, 0.0
      %v610 = vadd.f32 %v606, 0.0
      %611 = vrot.lane.b32.xlu0 %v578, 16
      %v612 = vpop.permute.xlu0 %611
      %613 = vrot.lane.b32.xlu0 %v580, 16
      %v614 = vpop.permute.xlu0 %613
      %615 = vrot.lane.b32.xlu0 %v579, 16
      %v616 = vpop.permute.xlu0 %615
      %617 = vrot.lane.b32.xlu0 %v581, 16
      %v618 = vpop.permute.xlu0 %617
      %vm619 = vcmp.lt.s32.totalorder %v593, 16
      %v620 = vsel %vm619, %v612, %v616
      %v621 = vsel %vm619, %v614, %v618
      %v622 = vsel %vm619, %v616, %v612
      %v623 = vsel %vm619, %v618, %v614
      %s624 = scalar_lea.vmem %s1, 32
      %v625 = vld [vmem:[%s624] sm:$0xff]
      %v626 = vld [vmem:[%s624 + $0x8] sm:$0xff]
      %v627 = vld [vmem:[%s624 + $0x10] sm:$0xff]
      %v628 = vld [vmem:[%s624 + $0x18] sm:$0xff]
      %v629 = vmul.f32 %v622, %v625
      %v630 = vmul.f32 %v620, %v626
      %v631 = vmul.f32 %v623, %v627
      %v632 = vmul.f32 %v621, %v628
      %v633 = vadd.f32 %v607, %v629
      %v634 = vadd.f32 %v608, %v630
      %v635 = vadd.f32 %v609, %v631
      %v636 = vadd.f32 %v610, %v632
      %637 = vrot.lane.b32.xlu0 %v578, 15
      %v638 = vpop.permute.xlu0 %637
      %639 = vrot.lane.b32.xlu0 %v580, 15
      %v640 = vpop.permute.xlu0 %639
      %641 = vrot.lane.b32.xlu0 %v579, 15
      %v642 = vpop.permute.xlu0 %641
      %643 = vrot.lane.b32.xlu0 %v581, 15
      %v644 = vpop.permute.xlu0 %643
      %vm645 = vcmp.lt.s32.totalorder %v593, 15
      %v646 = vsel %vm645, %v638, %v642
      %v647 = vsel %vm645, %v640, %v644
      %v648 = vsel %vm645, %v642, %v638
      %v649 = vsel %vm645, %v644, %v640
      %s650 = scalar_lea.vmem %s1, 64
      %v651 = vld [vmem:[%s650] sm:$0xff]
      %v652 = vld [vmem:[%s650 + $0x8] sm:$0xff]
      %v653 = vld [vmem:[%s650 + $0x10] sm:$0xff]
      %v654 = vld [vmem:[%s650 + $0x18] sm:$0xff]
      %v655 = vmul.f32 %v648, %v651
      %v656 = vmul.f32 %v646, %v652
      %v657 = vmul.f32 %v649, %v653
      %v658 = vmul.f32 %v647, %v654
      %v659 = vadd.f32 %v633, %v655
      %v660 = vadd.f32 %v634, %v656
      %v661 = vadd.f32 %v635, %v657
      %v662 = vadd.f32 %v636, %v658
      %663 = vrot.lane.b32.xlu0 %v578, 1
      %v664 = vpop.permute.xlu0 %663
      %665 = vrot.lane.b32.xlu0 %v580, 1
      %v666 = vpop.permute.xlu0 %665
      %667 = vrot.lane.b32.xlu0 %v579, 1
      %v668 = vpop.permute.xlu0 %667
      %669 = vrot.lane.b32.xlu0 %v581, 1
      %v670 = vpop.permute.xlu0 %669
      %vm671 = vcmp.lt.s32.totalorder %v593, 1
      %v672 = vsel %vm671, %v664, %v668
      %v673 = vsel %vm671, %v666, %v670
      %v674 = vsel %vm671, %v668, %v664
      %v675 = vsel %vm671, %v670, %v666
      %s676 = scalar_lea.vmem %s1, 96
      %v677 = vld [vmem:[%s676] sm:$0xff]
      %v678 = vld [vmem:[%s676 + $0x8] sm:$0xff]
      %v679 = vld [vmem:[%s676 + $0x10] sm:$0xff]
      %v680 = vld [vmem:[%s676 + $0x18] sm:$0xff]
      %v681 = vmul.f32 %v674, %v677
      %v682 = vmul.f32 %v672, %v678
      %v683 = vmul.f32 %v675, %v679
      %v684 = vmul.f32 %v673, %v680
      %v685 = vadd.f32 %v659, %v681
      %v686 = vadd.f32 %v660, %v682
      %v687 = vadd.f32 %v661, %v683
      %v688 = vadd.f32 %v662, %v684
      %s689 = scalar_lea.vmem %s1, 128
      %v690 = vld [vmem:[%s689] sm:$0xff]
      %v691 = vld [vmem:[%s689 + $0x8] sm:$0xff]
      %v692 = vld [vmem:[%s689 + $0x10] sm:$0xff]
      %v693 = vld [vmem:[%s689 + $0x18] sm:$0xff]
      %v694 = vmul.f32 %v578, %v690
      %v695 = vmul.f32 %v579, %v691
      %v696 = vmul.f32 %v580, %v692
      %v697 = vmul.f32 %v581, %v693
      %v698 = vadd.f32 %v685, %v694
      %v699 = vadd.f32 %v686, %v695
      %v700 = vadd.f32 %v687, %v696
      %v701 = vadd.f32 %v688, %v697
      %702 = vrot.lane.b32.xlu0 %v578, 127
      %v703 = vpop.permute.xlu0 %702
      %704 = vrot.lane.b32.xlu0 %v580, 127
      %v705 = vpop.permute.xlu0 %704
      %706 = vrot.lane.b32.xlu0 %v579, 127
      %v707 = vpop.permute.xlu0 %706
      %708 = vrot.lane.b32.xlu0 %v581, 127
      %v709 = vpop.permute.xlu0 %708
      %vm710 = vcmp.lt.s32.totalorder %v593, 127
      %v711 = vsel %vm710, %v703, %v707
      %v712 = vsel %vm710, %v705, %v709
      %v713 = vsel %vm710, %v707, %v703
      %v714 = vsel %vm710, %v709, %v705
      %s715 = scalar_lea.vmem %s1, 160
      %v716 = vld [vmem:[%s715] sm:$0xff]
      %v717 = vld [vmem:[%s715 + $0x8] sm:$0xff]
      %v718 = vld [vmem:[%s715 + $0x10] sm:$0xff]
      %v719 = vld [vmem:[%s715 + $0x18] sm:$0xff]
      %v720 = vmul.f32 %v711, %v716
      %v721 = vmul.f32 %v713, %v717
      %v722 = vmul.f32 %v712, %v718
      %v723 = vmul.f32 %v714, %v719
      %v724 = vadd.f32 %v698, %v720
      %v725 = vadd.f32 %v699, %v721
      %v726 = vadd.f32 %v700, %v722
      %v727 = vadd.f32 %v701, %v723
      %728 = vrot.lane.b32.xlu0 %v578, 113
      %v729 = vpop.permute.xlu0 %728
      %730 = vrot.lane.b32.xlu0 %v580, 113
      %v731 = vpop.permute.xlu0 %730
      %732 = vrot.lane.b32.xlu0 %v579, 113
      %v733 = vpop.permute.xlu0 %732
      %734 = vrot.lane.b32.xlu0 %v581, 113
      %v735 = vpop.permute.xlu0 %734
      %vm736 = vcmp.lt.s32.totalorder %v593, 113
      %v737 = vsel %vm736, %v729, %v733
      %v738 = vsel %vm736, %v731, %v735
      %v739 = vsel %vm736, %v733, %v729
      %v740 = vsel %vm736, %v735, %v731
      %s741 = scalar_lea.vmem %s1, 192
      %v742 = vld [vmem:[%s741] sm:$0xff]
      %v743 = vld [vmem:[%s741 + $0x8] sm:$0xff]
      %v744 = vld [vmem:[%s741 + $0x10] sm:$0xff]
      %v745 = vld [vmem:[%s741 + $0x18] sm:$0xff]
      %v746 = vmul.f32 %v737, %v742
      %v747 = vmul.f32 %v739, %v743
      %v748 = vmul.f32 %v738, %v744
      %v749 = vmul.f32 %v740, %v745
      %v750 = vadd.f32 %v724, %v746
      %v751 = vadd.f32 %v725, %v747
      %v752 = vadd.f32 %v726, %v748
      %v753 = vadd.f32 %v727, %v749
      %754 = vrot.lane.b32.xlu0 %v578, 112
      %v755 = vpop.permute.xlu0 %754
      %756 = vrot.lane.b32.xlu0 %v580, 112
      %v757 = vpop.permute.xlu0 %756
      %758 = vrot.lane.b32.xlu0 %v579, 112
      %v759 = vpop.permute.xlu0 %758
      %760 = vrot.lane.b32.xlu0 %v581, 112
      %v761 = vpop.permute.xlu0 %760
      %vm762 = vcmp.lt.s32.totalorder %v593, 112
      %v763 = vsel %vm762, %v755, %v759
      %v764 = vsel %vm762, %v757, %v761
      %v765 = vsel %vm762, %v759, %v755
      %v766 = vsel %vm762, %v761, %v757
      %s767 = scalar_lea.vmem %s1, 224
      %v768 = vld [vmem:[%s767] sm:$0xff]
      %v769 = vld [vmem:[%s767 + $0x8] sm:$0xff]
      %v770 = vld [vmem:[%s767 + $0x10] sm:$0xff]
      %v771 = vld [vmem:[%s767 + $0x18] sm:$0xff]
      %v772 = vmul.f32 %v763, %v768
      %v773 = vmul.f32 %v765, %v769
      %v774 = vmul.f32 %v764, %v770
      %v775 = vmul.f32 %v766, %v771
      %v776 = vadd.f32 %v750, %v772
      %v777 = vadd.f32 %v751, %v773
      %v778 = vadd.f32 %v752, %v774
      %v779 = vadd.f32 %v753, %v775
      %780 = vrot.lane.b32.xlu0 %v578, 111
      %v781 = vpop.permute.xlu0 %780
      %782 = vrot.lane.b32.xlu0 %v580, 111
      %v783 = vpop.permute.xlu0 %782
      %784 = vrot.lane.b32.xlu0 %v579, 111
      %v785 = vpop.permute.xlu0 %784
      %786 = vrot.lane.b32.xlu0 %v581, 111
      %v787 = vpop.permute.xlu0 %786
      %vm788 = vcmp.lt.s32.totalorder %v593, 111
      %v789 = vsel %vm788, %v781, %v785
      %v790 = vsel %vm788, %v783, %v787
      %v791 = vsel %vm788, %v785, %v781
      %v792 = vsel %vm788, %v787, %v783
      %s793 = scalar_lea.vmem %s1, 256
      %v794 = vld [vmem:[%s793] sm:$0xff]
      %v795 = vld [vmem:[%s793 + $0x8] sm:$0xff]
      %v796 = vld [vmem:[%s793 + $0x10] sm:$0xff]
      %v797 = vld [vmem:[%s793 + $0x18] sm:$0xff]
      %v798 = vmul.f32 %v789, %v794
      %v799 = vmul.f32 %v791, %v795
      %v800 = vmul.f32 %v790, %v796
      %v801 = vmul.f32 %v792, %v797
      %v802 = vadd.f32 %v776, %v798
      %v803 = vadd.f32 %v777, %v799
      %v804 = vadd.f32 %v778, %v800
      %v805 = vadd.f32 %v779, %v801
      %v806 = vld [vmem:[%s2] sm:$0xff]
      %v807 = vld [vmem:[%s2 + $0x8] sm:$0xff]
      %809 = vset.pattern.permute.xlu0 0
      %810 = vperm.xlu0 %809, %v806
      %v811 = vpop.permute.xlu0 %810
      %814 = vset.pattern.permute.xlu0 0
      %815 = vperm.xlu0 %814, %v807
      %v816 = vpop.permute.xlu0 %815
      %v818 = vadd.f32 %v802, %v811
      %v819 = vadd.f32 %v803, %v811
      %v820 = vadd.f32 %v804, %v816
      %v821 = vadd.f32 %v805, %v816
      %vm822 = vcmask 130048
      %v824 = vsel %vm822, %v582, 0
      %v827 = vsel %vm822, %v583, 0
      %829 = vmatprep.subr.mxu0 %v819
      %830 = vmatpush1.msra.mxu0 %v818
      %831 = vmatprep.subr.mxu0 %v821
      %832 = vmatpush1.msra.mxu0 %v820
      %833 = vmatprep.subr.mxu0 0.0
      %834 = vmatpush1.msra.mxu0 0.0
      %835 = vmatprep.subr.mxu0 0.0
      %836 = vmatpush1.msra.mxu0 0.0
      %837 = vmatprep.subr.mxu0 0.0
      %838 = vmatpush1.msra.mxu0 0.0
      %839 = vmatprep.subr.mxu0 0.0
      %840 = vmatpush1.msra.mxu0 0.0
      %841 = vmatprep.subr.mxu0 0.0
      %842 = vmatpush1.msra.mxu0 0.0
      %843 = vmatprep.subr.mxu0 0.0
      %844 = vmatpush1.msra.mxu0 0.0
      %845 = vmatprep.subr.mxu0 0.0
      %846 = vmatpush1.msra.mxu0 0.0
      %847 = vmatprep.subr.mxu0 0.0
      %848 = vmatpush1.msra.mxu0 0.0
      %849 = vmatprep.subr.mxu0 0.0
      %850 = vmatpush1.msra.mxu0 0.0
      %851 = vmatprep.subr.mxu0 0.0
      %852 = vmatpush1.msra.mxu0 0.0
      %853 = vmatprep.subr.mxu0 0.0
      %854 = vmatpush1.msra.mxu0 0.0
      %855 = vmatprep.subr.mxu0 0.0
      %856 = vmatpush1.msra.mxu0 0.0
      %857 = vmatprep.subr.mxu0 0.0
      %858 = vmatpush1.msra.mxu0 0.0
      %859 = vmatprep.subr.mxu0 0.0
      %860 = vmatpush1.msra.mxu0 0.0
      %861 = vmatprep.subr.mxu0 0.0
      %862 = vmatpush1.msra.mxu0 0.0
      %863 = vmatprep.subr.mxu0 0.0
      %864 = vmatpush1.msra.mxu0 0.0
      %865 = vmatprep.subr.mxu0 0.0
      %866 = vmatpush1.msra.mxu0 0.0
      %867 = vmatprep.subr.mxu0 0.0
      %868 = vmatpush1.msra.mxu0 0.0
      %869 = vmatprep.subr.mxu0 0.0
      %870 = vmatpush1.msra.mxu0 0.0
      %871 = vmatprep.subr.mxu0 0.0
      %872 = vmatpush1.msra.mxu0 0.0
      %873 = vmatprep.subr.mxu0 0.0
      %874 = vmatpush1.msra.mxu0 0.0
      %875 = vmatprep.subr.mxu0 0.0
      %876 = vmatpush1.msra.mxu0 0.0
      %877 = vmatprep.subr.mxu0 0.0
      %878 = vmatpush1.msra.mxu0 0.0
      %879 = vmatprep.subr.mxu0 0.0
      %880 = vmatpush1.msra.mxu0 0.0
      %881 = vmatprep.subr.mxu0 0.0
      %882 = vmatpush1.msra.mxu0 0.0
      %883 = vmatprep.subr.mxu0 0.0
      %884 = vmatpush1.msra.mxu0 0.0
      %885 = vmatprep.subr.mxu0 0.0
      %886 = vmatpush1.msra.mxu0 0.0
      %887 = vmatprep.subr.mxu0 0.0
      %888 = vmatpush1.msra.mxu0 0.0
      %889 = vmatprep.subr.mxu0 0.0
      %890 = vmatpush1.msra.mxu0 0.0
      %891 = vmatprep.subr.mxu0 0.0
      %892 = vmatpush1.msra.mxu0 0.0
      %893 = vmatprep.mubr.f32.mxu0 0.0
      %894 = vmatmul.mubr.f32.gmra.mrb[0].mxu0 %v824
      %v895 = vpop.f32.mrb[0].mxu0
      %v896 = vadd.f32 0.0, %v895
      %v897 = vpop.f32.mrb[0].mxu0
      %v898 = vadd.f32 0.0, %v897
      %899 = vmatprep.mubr.f32.mxu0 0.0
      %900 = vmatmul.mubr.f32.gmra.mrb[0].mxu0 %v827
      %v901 = vpop.f32.mrb[0].mxu0
      %v902 = vadd.f32 0.0, %v901
      %v903 = vpop.f32.mrb[0].mxu0
      %v904 = vadd.f32 0.0, %v903
      %905 = vdwg.mxu0
      %vm906 = vcmp.ge.f32.partialorder %v896, 0.0
      %vm907 = vcmp.ge.f32.partialorder %v898, 0.0
      %vm908 = vcmp.ge.f32.partialorder %v902, 0.0
      %vm909 = vcmp.ge.f32.partialorder %v904, 0.0
      %v910 = vmul.f32 %v896, 0.05
      %v911 = vmul.f32 %v898, 0.05
      %v912 = vmul.f32 %v902, 0.05
      %v913 = vmul.f32 %v904, 0.05
      %v914 = vsel %vm906, %v896, %v910
      %v915 = vsel %vm907, %v898, %v911
      %v916 = vsel %vm908, %v902, %v912
      %v917 = vsel %vm909, %v904, %v913
      %v918 = vld [vmem:[%s4] sm:$0xf]
      %v919 = vld [vmem:[%s5] sm:$0xf]
      %921 = vset.pattern.permute.xlu0 0
      %922 = vperm.xlu0 %921, %v919
      %v923 = vpop.permute.xlu0 %922
      %v926 = vsel %vm822, %v918, 0
      %928 = vmatprep.subr.mxu0 %v915
      %929 = vmatpush1.msra.mxu0 %v914
      %930 = vmatprep.subr.mxu0 %v917
      %931 = vmatpush1.msra.mxu0 %v916
      %932 = vmatprep.subr.mxu0 0.0
      %933 = vmatpush1.msra.mxu0 0.0
      %934 = vmatprep.subr.mxu0 0.0
      %935 = vmatpush1.msra.mxu0 0.0
      %936 = vmatprep.subr.mxu0 0.0
      %937 = vmatpush1.msra.mxu0 0.0
      %938 = vmatprep.subr.mxu0 0.0
      %939 = vmatpush1.msra.mxu0 0.0
      %940 = vmatprep.subr.mxu0 0.0
      %941 = vmatpush1.msra.mxu0 0.0
      %942 = vmatprep.subr.mxu0 0.0
      %943 = vmatpush1.msra.mxu0 0.0
      %944 = vmatprep.subr.mxu0 0.0
      %945 = vmatpush1.msra.mxu0 0.0
      %946 = vmatprep.subr.mxu0 0.0
      %947 = vmatpush1.msra.mxu0 0.0
      %948 = vmatprep.subr.mxu0 0.0
      %949 = vmatpush1.msra.mxu0 0.0
      %950 = vmatprep.subr.mxu0 0.0
      %951 = vmatpush1.msra.mxu0 0.0
      %952 = vmatprep.subr.mxu0 0.0
      %953 = vmatpush1.msra.mxu0 0.0
      %954 = vmatprep.subr.mxu0 0.0
      %955 = vmatpush1.msra.mxu0 0.0
      %956 = vmatprep.subr.mxu0 0.0
      %957 = vmatpush1.msra.mxu0 0.0
      %958 = vmatprep.subr.mxu0 0.0
      %959 = vmatpush1.msra.mxu0 0.0
      %960 = vmatprep.subr.mxu0 0.0
      %961 = vmatpush1.msra.mxu0 0.0
      %962 = vmatprep.subr.mxu0 0.0
      %963 = vmatpush1.msra.mxu0 0.0
      %964 = vmatprep.subr.mxu0 0.0
      %965 = vmatpush1.msra.mxu0 0.0
      %966 = vmatprep.subr.mxu0 0.0
      %967 = vmatpush1.msra.mxu0 0.0
      %968 = vmatprep.subr.mxu0 0.0
      %969 = vmatpush1.msra.mxu0 0.0
      %970 = vmatprep.subr.mxu0 0.0
      %971 = vmatpush1.msra.mxu0 0.0
      %972 = vmatprep.subr.mxu0 0.0
      %973 = vmatpush1.msra.mxu0 0.0
      %974 = vmatprep.subr.mxu0 0.0
      %975 = vmatpush1.msra.mxu0 0.0
      %976 = vmatprep.subr.mxu0 0.0
      %977 = vmatpush1.msra.mxu0 0.0
      %978 = vmatprep.subr.mxu0 0.0
      %979 = vmatpush1.msra.mxu0 0.0
      %980 = vmatprep.subr.mxu0 0.0
      %981 = vmatpush1.msra.mxu0 0.0
      %982 = vmatprep.subr.mxu0 0.0
      %983 = vmatpush1.msra.mxu0 0.0
      %984 = vmatprep.subr.mxu0 0.0
      %985 = vmatpush1.msra.mxu0 0.0
      %986 = vmatprep.subr.mxu0 0.0
      %987 = vmatpush1.msra.mxu0 0.0
      %988 = vmatprep.subr.mxu0 0.0
      %989 = vmatpush1.msra.mxu0 0.0
      %990 = vmatprep.subr.mxu0 0.0
      %991 = vmatpush1.msra.mxu0 0.0
      %992 = vmatprep.mubr.f32.mxu0 0.0
      %993 = vmatmul.mubr.f32.gmra.mrb[0].mxu0 %v926
      %v994 = vpop.f32.mrb[0].mxu0
      %v995 = vadd.f32 %v923, %v994
      %v996 = vpop.f32.mrb[0].mxu0
      %v997 = vadd.f32 %v923, %v996
      %998 = vdwg.mxu0
      %v999 = vmax.f32 %v995, 0.0
      %v1000 = vmax.f32 %v997, 0.0
      %v1001 = vld [vmem:[%s6] sm:$0xff]
      %v1002 = vld [vmem:[%s6 + $0x8] sm:$0x1]
      %v1003 = vld [vmem:[%s7] sm:$0xff]
      %v1004 = vld [vmem:[%s7 + $0x8] sm:$0x1]
      %1006 = vset.pattern.permute.xlu0 0
      %1007 = vperm.xlu0 %1006, %v1003
      %v1008 = vpop.permute.xlu0 %1007
      %1011 = vset.pattern.permute.xlu0 0
      %1012 = vperm.xlu0 %1011, %v1004
      %v1013 = vpop.permute.xlu0 %1012
      %vm1015 = vcmask 31744
      %v1017 = vsel %vm1015, %v1001, 0
      %v1020 = vsel %vm1015, %v1002, 0
      %vm1022 = vcmask 1043456
      %v1024 = vsel %vm1022, %v999, 0
      %v1027 = vsel %vm1022, %v1000, 0
      %1029 = vmatprep.subr.mxu0 %v1027
      %1030 = vmatpush1.msra.mxu0 %v1024
      %1031 = vmatprep.subr.mxu0 0.0
      %1032 = vmatpush1.msra.mxu0 0.0
      %1033 = vmatprep.subr.mxu0 0.0
      %1034 = vmatpush1.msra.mxu0 0.0
      %1035 = vmatprep.subr.mxu0 0.0
      %1036 = vmatpush1.msra.mxu0 0.0
      %1037 = vmatprep.subr.mxu0 0.0
      %1038 = vmatpush1.msra.mxu0 0.0
      %1039 = vmatprep.subr.mxu0 0.0
      %1040 = vmatpush1.msra.mxu0 0.0
      %1041 = vmatprep.subr.mxu0 0.0
      %1042 = vmatpush1.msra.mxu0 0.0
      %1043 = vmatprep.subr.mxu0 0.0
      %1044 = vmatpush1.msra.mxu0 0.0
      %1045 = vmatprep.subr.mxu0 0.0
      %1046 = vmatpush1.msra.mxu0 0.0
      %1047 = vmatprep.subr.mxu0 0.0
      %1048 = vmatpush1.msra.mxu0 0.0
      %1049 = vmatprep.subr.mxu0 0.0
      %1050 = vmatpush1.msra.mxu0 0.0
      %1051 = vmatprep.subr.mxu0 0.0
      %1052 = vmatpush1.msra.mxu0 0.0
      %1053 = vmatprep.subr.mxu0 0.0
      %1054 = vmatpush1.msra.mxu0 0.0
      %1055 = vmatprep.subr.mxu0 0.0
      %1056 = vmatpush1.msra.mxu0 0.0
      %1057 = vmatprep.subr.mxu0 0.0
      %1058 = vmatpush1.msra.mxu0 0.0
      %1059 = vmatprep.subr.mxu0 0.0
      %1060 = vmatpush1.msra.mxu0 0.0
      %1061 = vmatprep.subr.mxu0 0.0
      %1062 = vmatpush1.msra.mxu0 0.0
      %1063 = vmatprep.subr.mxu0 0.0
      %1064 = vmatpush1.msra.mxu0 0.0
      %1065 = vmatprep.subr.mxu0 0.0
      %1066 = vmatpush1.msra.mxu0 0.0
      %1067 = vmatprep.subr.mxu0 0.0
      %1068 = vmatpush1.msra.mxu0 0.0
      %1069 = vmatprep.subr.mxu0 0.0
      %1070 = vmatpush1.msra.mxu0 0.0
      %1071 = vmatprep.subr.mxu0 0.0
      %1072 = vmatpush1.msra.mxu0 0.0
      %1073 = vmatprep.subr.mxu0 0.0
      %1074 = vmatpush1.msra.mxu0 0.0
      %1075 = vmatprep.subr.mxu0 0.0
      %1076 = vmatpush1.msra.mxu0 0.0
      %1077 = vmatprep.subr.mxu0 0.0
      %1078 = vmatpush1.msra.mxu0 0.0
      %1079 = vmatprep.subr.mxu0 0.0
      %1080 = vmatpush1.msra.mxu0 0.0
      %1081 = vmatprep.subr.mxu0 0.0
      %1082 = vmatpush1.msra.mxu0 0.0
      %1083 = vmatprep.subr.mxu0 0.0
      %1084 = vmatpush1.msra.mxu0 0.0
      %1085 = vmatprep.subr.mxu0 0.0
      %1086 = vmatpush1.msra.mxu0 0.0
      %1087 = vmatprep.subr.mxu0 0.0
      %1088 = vmatpush1.msra.mxu0 0.0
      %1089 = vmatprep.subr.mxu0 0.0
      %1090 = vmatpush1.msra.mxu0 0.0
      %1091 = vmatprep.subr.mxu0 0.0
      %1092 = vmatpush1.msra.mxu0 0.0
      %1093 = vmatprep.mubr.f32.mxu0 0.0
      %1094 = vmatmul.mubr.f32.gmra.mrb[0].mxu0 %v1017
      %v1095 = vpop.f32.mrb[0].mxu0
      %v1096 = vadd.f32 %v1008, %v1095
      %v1097 = vpop.f32.mrb[0].mxu0
      %v1098 = vadd.f32 %v1008, %v1097
      %1099 = vmatprep.mubr.f32.mxu0 0.0
      %1100 = vmatmul.mubr.f32.gmra.mrb[0].mxu0 %v1020
      %v1101 = vpop.f32.mrb[0].mxu0
      %v1102 = vadd.f32 %v1013, %v1101
      %v1103 = vpop.f32.mrb[0].mxu0
      %v1104 = vadd.f32 %v1013, %v1103
      %1105 = vdwg.mxu0
      %v1106 = vld [vmem:[%s8] sm:$0xff]
      %v1107 = vld [vmem:[%s8 + $0x8] sm:$0xff]
      %v1108 = vld [vmem:[%s8 + $0x10] sm:$0x1]
      %v1109 = vld [vmem:[%s8 + $0x18] sm:$0x1]
      %v1110 = vmul.f32 %v1096, %v1106
      %v1111 = vmul.f32 %v1098, %v1107
      %v1112 = vmul.f32 %v1102, %v1108
      %v1113 = vmul.f32 %v1104, %v1109
      %1114 = vrot.lane.b32.xlu0 %v914, 17
      %v1115 = vpop.permute.xlu0 %1114
      %1116 = vrot.lane.b32.xlu0 %v916, 17
      %v1117 = vpop.permute.xlu0 %1116
      %1118 = vrot.lane.b32.xlu0 %v915, 17
      %v1119 = vpop.permute.xlu0 %1118
      %1120 = vrot.lane.b32.xlu0 %v917, 17
      %v1121 = vpop.permute.xlu0 %1120
      %v1122 = vsel %vm594, %v1115, %v1119
      %v1123 = vsel %vm594, %v1117, %v1121
      %v1124 = vsel %vm594, %v1119, %v1115
      %v1125 = vsel %vm594, %v1121, %v1117
      %v1126 = vlaneseq
      %v1127 = vshrl.u32 %v1126, 7
      %v1128 = vsub.s32 0, %v1127
      %v1129 = vrot.slane %v1110, %v1128
      %v1130 = vlaneseq
      %v1131 = vshrl.u32 %v1130, 7
      %v1132 = vsub.s32 0, %v1131
      %v1133 = vrot.slane %v1111, %v1132
      %v1134 = vmul.f32 %v1124, %v1129
      %v1135 = vmul.f32 %v1122, %v1133
      %v1136 = vmul.f32 %v1125, %v1129
      %v1137 = vmul.f32 %v1123, %v1133
      %v1138 = vadd.f32 %v1134, 0.0
      %v1139 = vadd.f32 %v1135, 0.0
      %v1140 = vadd.f32 %v1136, 0.0
      %v1141 = vadd.f32 %v1137, 0.0
      %1142 = vrot.lane.b32.xlu0 %v914, 16
      %v1143 = vpop.permute.xlu0 %1142
      %1144 = vrot.lane.b32.xlu0 %v916, 16
      %v1145 = vpop.permute.xlu0 %1144
      %1146 = vrot.lane.b32.xlu0 %v915, 16
      %v1147 = vpop.permute.xlu0 %1146
      %1148 = vrot.lane.b32.xlu0 %v917, 16
      %v1149 = vpop.permute.xlu0 %1148
      %v1150 = vsel %vm619, %v1143, %v1147
      %v1151 = vsel %vm619, %v1145, %v1149
      %v1152 = vsel %vm619, %v1147, %v1143
      %v1153 = vsel %vm619, %v1149, %v1145
      %v1154 = vlaneseq
      %v1155 = vshrl.u32 %v1154, 7
      %v1156 = vsub.s32 1, %v1155
      %v1157 = vrot.slane %v1110, %v1156
      %v1158 = vlaneseq
      %v1159 = vshrl.u32 %v1158, 7
      %v1160 = vsub.s32 1, %v1159
      %v1161 = vrot.slane %v1111, %v1160
      %v1162 = vmul.f32 %v1152, %v1157
      %v1163 = vmul.f32 %v1150, %v1161
      %v1164 = vmul.f32 %v1153, %v1157
      %v1165 = vmul.f32 %v1151, %v1161
      %v1166 = vadd.f32 %v1138, %v1162
      %v1167 = vadd.f32 %v1139, %v1163
      %v1168 = vadd.f32 %v1140, %v1164
      %v1169 = vadd.f32 %v1141, %v1165
      %1170 = vrot.lane.b32.xlu0 %v914, 15
      %v1171 = vpop.permute.xlu0 %1170
      %1172 = vrot.lane.b32.xlu0 %v916, 15
      %v1173 = vpop.permute.xlu0 %1172
      %1174 = vrot.lane.b32.xlu0 %v915, 15
      %v1175 = vpop.permute.xlu0 %1174
      %1176 = vrot.lane.b32.xlu0 %v917, 15
      %v1177 = vpop.permute.xlu0 %1176
      %v1178 = vsel %vm645, %v1171, %v1175
      %v1179 = vsel %vm645, %v1173, %v1177
      %v1180 = vsel %vm645, %v1175, %v1171
      %v1181 = vsel %vm645, %v1177, %v1173
      %v1182 = vlaneseq
      %v1183 = vshrl.u32 %v1182, 7
      %v1184 = vsub.s32 2, %v1183
      %v1185 = vrot.slane %v1110, %v1184
      %v1186 = vlaneseq
      %v1187 = vshrl.u32 %v1186, 7
      %v1188 = vsub.s32 2, %v1187
      %v1189 = vrot.slane %v1111, %v1188
      %v1190 = vmul.f32 %v1180, %v1185
      %v1191 = vmul.f32 %v1178, %v1189
      %v1192 = vmul.f32 %v1181, %v1185
      %v1193 = vmul.f32 %v1179, %v1189
      %v1194 = vadd.f32 %v1166, %v1190
      %v1195 = vadd.f32 %v1167, %v1191
      %v1196 = vadd.f32 %v1168, %v1192
      %v1197 = vadd.f32 %v1169, %v1193
      %1198 = vrot.lane.b32.xlu0 %v914, 1
      %v1199 = vpop.permute.xlu0 %1198
      %1200 = vrot.lane.b32.xlu0 %v916, 1
      %v1201 = vpop.permute.xlu0 %1200
      %1202 = vrot.lane.b32.xlu0 %v915, 1
      %v1203 = vpop.permute.xlu0 %1202
      %1204 = vrot.lane.b32.xlu0 %v917, 1
      %v1205 = vpop.permute.xlu0 %1204
      %v1206 = vsel %vm671, %v1199, %v1203
      %v1207 = vsel %vm671, %v1201, %v1205
      %v1208 = vsel %vm671, %v1203, %v1199
      %v1209 = vsel %vm671, %v1205, %v1201
      %v1210 = vlaneseq
      %v1211 = vshrl.u32 %v1210, 7
      %v1212 = vsub.s32 3, %v1211
      %v1213 = vrot.slane %v1110, %v1212
      %v1214 = vlaneseq
      %v1215 = vshrl.u32 %v1214, 7
      %v1216 = vsub.s32 3, %v1215
      %v1217 = vrot.slane %v1111, %v1216
      %v1218 = vmul.f32 %v1208, %v1213
      %v1219 = vmul.f32 %v1206, %v1217
      %v1220 = vmul.f32 %v1209, %v1213
      %v1221 = vmul.f32 %v1207, %v1217
      %v1222 = vadd.f32 %v1194, %v1218
      %v1223 = vadd.f32 %v1195, %v1219
      %v1224 = vadd.f32 %v1196, %v1220
      %v1225 = vadd.f32 %v1197, %v1221
      %v1226 = vlaneseq
      %v1227 = vshrl.u32 %v1226, 7
      %v1228 = vsub.s32 4, %v1227
      %v1229 = vrot.slane %v1110, %v1228
      %v1230 = vlaneseq
      %v1231 = vshrl.u32 %v1230, 7
      %v1232 = vsub.s32 4, %v1231
      %v1233 = vrot.slane %v1111, %v1232
      %v1234 = vmul.f32 %v914, %v1229
      %v1235 = vmul.f32 %v915, %v1233
      %v1236 = vmul.f32 %v916, %v1229
      %v1237 = vmul.f32 %v917, %v1233
      %v1238 = vadd.f32 %v1222, %v1234
      %v1239 = vadd.f32 %v1223, %v1235
      %v1240 = vadd.f32 %v1224, %v1236
      %v1241 = vadd.f32 %v1225, %v1237
      %1242 = vrot.lane.b32.xlu0 %v914, 127
      %v1243 = vpop.permute.xlu0 %1242
      %1244 = vrot.lane.b32.xlu0 %v916, 127
      %v1245 = vpop.permute.xlu0 %1244
      %1246 = vrot.lane.b32.xlu0 %v915, 127
      %v1247 = vpop.permute.xlu0 %1246
      %1248 = vrot.lane.b32.xlu0 %v917, 127
      %v1249 = vpop.permute.xlu0 %1248
      %v1250 = vsel %vm710, %v1243, %v1247
      %v1251 = vsel %vm710, %v1245, %v1249
      %v1252 = vsel %vm710, %v1247, %v1243
      %v1253 = vsel %vm710, %v1249, %v1245
      %v1254 = vlaneseq
      %v1255 = vshrl.u32 %v1254, 7
      %v1256 = vsub.s32 5, %v1255
      %v1257 = vrot.slane %v1110, %v1256
      %v1258 = vlaneseq
      %v1259 = vshrl.u32 %v1258, 7
      %v1260 = vsub.s32 5, %v1259
      %v1261 = vrot.slane %v1111, %v1260
      %v1262 = vmul.f32 %v1250, %v1257
      %v1263 = vmul.f32 %v1252, %v1261
      %v1264 = vmul.f32 %v1251, %v1257
      %v1265 = vmul.f32 %v1253, %v1261
      %v1266 = vadd.f32 %v1238, %v1262
      %v1267 = vadd.f32 %v1239, %v1263
      %v1268 = vadd.f32 %v1240, %v1264
      %v1269 = vadd.f32 %v1241, %v1265
      %1270 = vrot.lane.b32.xlu0 %v914, 113
      %v1271 = vpop.permute.xlu0 %1270
      %1272 = vrot.lane.b32.xlu0 %v916, 113
      %v1273 = vpop.permute.xlu0 %1272
      %1274 = vrot.lane.b32.xlu0 %v915, 113
      %v1275 = vpop.permute.xlu0 %1274
      %1276 = vrot.lane.b32.xlu0 %v917, 113
      %v1277 = vpop.permute.xlu0 %1276
      %v1278 = vsel %vm736, %v1271, %v1275
      %v1279 = vsel %vm736, %v1273, %v1277
      %v1280 = vsel %vm736, %v1275, %v1271
      %v1281 = vsel %vm736, %v1277, %v1273
      %v1282 = vlaneseq
      %v1283 = vshrl.u32 %v1282, 7
      %v1284 = vsub.s32 6, %v1283
      %v1285 = vrot.slane %v1110, %v1284
      %v1286 = vlaneseq
      %v1287 = vshrl.u32 %v1286, 7
      %v1288 = vsub.s32 6, %v1287
      %v1289 = vrot.slane %v1111, %v1288
      %v1290 = vmul.f32 %v1278, %v1285
      %v1291 = vmul.f32 %v1280, %v1289
      %v1292 = vmul.f32 %v1279, %v1285
      %v1293 = vmul.f32 %v1281, %v1289
      %v1294 = vadd.f32 %v1266, %v1290
      %v1295 = vadd.f32 %v1267, %v1291
      %v1296 = vadd.f32 %v1268, %v1292
      %v1297 = vadd.f32 %v1269, %v1293
      %1298 = vrot.lane.b32.xlu0 %v914, 112
      %v1299 = vpop.permute.xlu0 %1298
      %1300 = vrot.lane.b32.xlu0 %v916, 112
      %v1301 = vpop.permute.xlu0 %1300
      %1302 = vrot.lane.b32.xlu0 %v915, 112
      %v1303 = vpop.permute.xlu0 %1302
      %1304 = vrot.lane.b32.xlu0 %v917, 112
      %v1305 = vpop.permute.xlu0 %1304
      %v1306 = vsel %vm762, %v1299, %v1303
      %v1307 = vsel %vm762, %v1301, %v1305
      %v1308 = vsel %vm762, %v1303, %v1299
      %v1309 = vsel %vm762, %v1305, %v1301
      %v1310 = vlaneseq
      %v1311 = vshrl.u32 %v1310, 7
      %v1312 = vsub.s32 7, %v1311
      %v1313 = vrot.slane %v1110, %v1312
      %v1314 = vlaneseq
      %v1315 = vshrl.u32 %v1314, 7
      %v1316 = vsub.s32 7, %v1315
      %v1317 = vrot.slane %v1111, %v1316
      %v1318 = vmul.f32 %v1306, %v1313
      %v1319 = vmul.f32 %v1308, %v1317
      %v1320 = vmul.f32 %v1307, %v1313
      %v1321 = vmul.f32 %v1309, %v1317
      %v1322 = vadd.f32 %v1294, %v1318
      %v1323 = vadd.f32 %v1295, %v1319
      %v1324 = vadd.f32 %v1296, %v1320
      %v1325 = vadd.f32 %v1297, %v1321
      %1326 = vrot.lane.b32.xlu0 %v914, 111
      %v1327 = vpop.permute.xlu0 %1326
      %1328 = vrot.lane.b32.xlu0 %v916, 111
      %v1329 = vpop.permute.xlu0 %1328
      %1330 = vrot.lane.b32.xlu0 %v915, 111
      %v1331 = vpop.permute.xlu0 %1330
      %1332 = vrot.lane.b32.xlu0 %v917, 111
      %v1333 = vpop.permute.xlu0 %1332
      %v1334 = vsel %vm788, %v1327, %v1331
      %v1335 = vsel %vm788, %v1329, %v1333
      %v1336 = vsel %vm788, %v1331, %v1327
      %v1337 = vsel %vm788, %v1333, %v1329
      %v1338 = vlaneseq
      %v1339 = vshrl.u32 %v1338, 7
      %v1340 = vsub.s32 0, %v1339
      %v1341 = vrot.slane %v1112, %v1340
      %v1342 = vlaneseq
      %v1343 = vshrl.u32 %v1342, 7
      %v1344 = vsub.s32 0, %v1343
      %v1345 = vrot.slane %v1113, %v1344
      %v1346 = vmul.f32 %v1334, %v1341
      %v1347 = vmul.f32 %v1336, %v1345
      %v1348 = vmul.f32 %v1335, %v1341
      %v1349 = vmul.f32 %v1337, %v1345
      %v1350 = vadd.f32 %v1322, %v1346
      %v1351 = vadd.f32 %v1323, %v1347
      %v1352 = vadd.f32 %v1324, %v1348
      %v1353 = vadd.f32 %v1325, %v1349
      %vm1354 = vcmp.ge.f32.partialorder %v1350, 0.0
      %vm1355 = vcmp.ge.f32.partialorder %v1351, 0.0
      %vm1356 = vcmp.ge.f32.partialorder %v1352, 0.0
      %vm1357 = vcmp.ge.f32.partialorder %v1353, 0.0
      %v1358 = vmul.f32 %v1350, 0.05
      %v1359 = vmul.f32 %v1351, 0.05
      %v1360 = vmul.f32 %v1352, 0.05
      %v1361 = vmul.f32 %v1353, 0.05
      %v1362 = vsel %vm1354, %v1350, %v1358
      %v1363 = vsel %vm1355, %v1351, %v1359
      %v1364 = vsel %vm1356, %v1352, %v1360
      %v1365 = vsel %vm1357, %v1353, %v1361
      %v1366 = vld [vmem:[%s11] sm:$0xff]
      %v1367 = vld [vmem:[%s11 + $0x8] sm:$0xff]
      %1368 = vrot.lane.b32.xlu0 %v1362, 17
      %v1369 = vpop.permute.xlu0 %1368
      %1370 = vrot.lane.b32.xlu0 %v1364, 17
      %v1371 = vpop.permute.xlu0 %1370
      %1372 = vrot.lane.b32.xlu0 %v1363, 17
      %v1373 = vpop.permute.xlu0 %1372
      %1374 = vrot.lane.b32.xlu0 %v1365, 17
      %v1375 = vpop.permute.xlu0 %1374
      %v1376 = vsel %vm594, %v1369, %v1373
      %v1377 = vsel %vm594, %v1371, %v1375
      %v1378 = vsel %vm594, %v1373, %v1369
      %v1379 = vsel %vm594, %v1375, %v1371
      %v1380 = vld [vmem:[%s9] sm:$0xff]
      %v1381 = vld [vmem:[%s9 + $0x8] sm:$0xff]
      %v1382 = vld [vmem:[%s9 + $0x10] sm:$0xff]
      %v1383 = vld [vmem:[%s9 + $0x18] sm:$0xff]
      %v1384 = vmul.f32 %v1378, %v1380
      %v1385 = vmul.f32 %v1376, %v1381
      %v1386 = vmul.f32 %v1379, %v1382
      %v1387 = vmul.f32 %v1377, %v1383
      %v1388 = vadd.f32 %v1384, 0.0
      %v1389 = vadd.f32 %v1385, 0.0
      %v1390 = vadd.f32 %v1386, 0.0
      %v1391 = vadd.f32 %v1387, 0.0
      %1392 = vrot.lane.b32.xlu0 %v1362, 16
      %v1393 = vpop.permute.xlu0 %1392
      %1394 = vrot.lane.b32.xlu0 %v1364, 16
      %v1395 = vpop.permute.xlu0 %1394
      %1396 = vrot.lane.b32.xlu0 %v1363, 16
      %v1397 = vpop.permute.xlu0 %1396
      %1398 = vrot.lane.b32.xlu0 %v1365, 16
      %v1399 = vpop.permute.xlu0 %1398
      %v1400 = vsel %vm619, %v1393, %v1397
      %v1401 = vsel %vm619, %v1395, %v1399
      %v1402 = vsel %vm619, %v1397, %v1393
      %v1403 = vsel %vm619, %v1399, %v1395
      %s1404 = scalar_lea.vmem %s9, 32
      %v1405 = vld [vmem:[%s1404] sm:$0xff]
      %v1406 = vld [vmem:[%s1404 + $0x8] sm:$0xff]
      %v1407 = vld [vmem:[%s1404 + $0x10] sm:$0xff]
      %v1408 = vld [vmem:[%s1404 + $0x18] sm:$0xff]
      %v1409 = vmul.f32 %v1402, %v1405
      %v1410 = vmul.f32 %v1400, %v1406
      %v1411 = vmul.f32 %v1403, %v1407
      %v1412 = vmul.f32 %v1401, %v1408
      %v1413 = vadd.f32 %v1388, %v1409
      %v1414 = vadd.f32 %v1389, %v1410
      %v1415 = vadd.f32 %v1390, %v1411
      %v1416 = vadd.f32 %v1391, %v1412
      %1417 = vrot.lane.b32.xlu0 %v1362, 15
      %v1418 = vpop.permute.xlu0 %1417
      %1419 = vrot.lane.b32.xlu0 %v1364, 15
      %v1420 = vpop.permute.xlu0 %1419
      %1421 = vrot.lane.b32.xlu0 %v1363, 15
      %v1422 = vpop.permute.xlu0 %1421
      %1423 = vrot.lane.b32.xlu0 %v1365, 15
      %v1424 = vpop.permute.xlu0 %1423
      %v1425 = vsel %vm645, %v1418, %v1422
      %v1426 = vsel %vm645, %v1420, %v1424
      %v1427 = vsel %vm645, %v1422, %v1418
      %v1428 = vsel %vm645, %v1424, %v1420
      %s1429 = scalar_lea.vmem %s9, 64
      %v1430 = vld [vmem:[%s1429] sm:$0xff]
      %v1431 = vld [vmem:[%s1429 + $0x8] sm:$0xff]
      %v1432 = vld [vmem:[%s1429 + $0x10] sm:$0xff]
      %v1433 = vld [vmem:[%s1429 + $0x18] sm:$0xff]
      %v1434 = vmul.f32 %v1427, %v1430
      %v1435 = vmul.f32 %v1425, %v1431
      %v1436 = vmul.f32 %v1428, %v1432
      %v1437 = vmul.f32 %v1426, %v1433
      %v1438 = vadd.f32 %v1413, %v1434
      %v1439 = vadd.f32 %v1414, %v1435
      %v1440 = vadd.f32 %v1415, %v1436
      %v1441 = vadd.f32 %v1416, %v1437
      %1442 = vrot.lane.b32.xlu0 %v1362, 1
      %v1443 = vpop.permute.xlu0 %1442
      %1444 = vrot.lane.b32.xlu0 %v1364, 1
      %v1445 = vpop.permute.xlu0 %1444
      %1446 = vrot.lane.b32.xlu0 %v1363, 1
      %v1447 = vpop.permute.xlu0 %1446
      %1448 = vrot.lane.b32.xlu0 %v1365, 1
      %v1449 = vpop.permute.xlu0 %1448
      %v1450 = vsel %vm671, %v1443, %v1447
      %v1451 = vsel %vm671, %v1445, %v1449
      %v1452 = vsel %vm671, %v1447, %v1443
      %v1453 = vsel %vm671, %v1449, %v1445
      %s1454 = scalar_lea.vmem %s9, 96
      %v1455 = vld [vmem:[%s1454] sm:$0xff]
      %v1456 = vld [vmem:[%s1454 + $0x8] sm:$0xff]
      %v1457 = vld [vmem:[%s1454 + $0x10] sm:$0xff]
      %v1458 = vld [vmem:[%s1454 + $0x18] sm:$0xff]
      %v1459 = vmul.f32 %v1452, %v1455
      %v1460 = vmul.f32 %v1450, %v1456
      %v1461 = vmul.f32 %v1453, %v1457
      %v1462 = vmul.f32 %v1451, %v1458
      %v1463 = vadd.f32 %v1438, %v1459
      %v1464 = vadd.f32 %v1439, %v1460
      %v1465 = vadd.f32 %v1440, %v1461
      %v1466 = vadd.f32 %v1441, %v1462
      %s1467 = scalar_lea.vmem %s9, 128
      %v1468 = vld [vmem:[%s1467] sm:$0xff]
      %v1469 = vld [vmem:[%s1467 + $0x8] sm:$0xff]
      %v1470 = vld [vmem:[%s1467 + $0x10] sm:$0xff]
      %v1471 = vld [vmem:[%s1467 + $0x18] sm:$0xff]
      %v1472 = vmul.f32 %v1362, %v1468
      %v1473 = vmul.f32 %v1363, %v1469
      %v1474 = vmul.f32 %v1364, %v1470
      %v1475 = vmul.f32 %v1365, %v1471
      %v1476 = vadd.f32 %v1463, %v1472
      %v1477 = vadd.f32 %v1464, %v1473
      %v1478 = vadd.f32 %v1465, %v1474
      %v1479 = vadd.f32 %v1466, %v1475
      %1480 = vrot.lane.b32.xlu0 %v1362, 127
      %v1481 = vpop.permute.xlu0 %1480
      %1482 = vrot.lane.b32.xlu0 %v1364, 127
      %v1483 = vpop.permute.xlu0 %1482
      %1484 = vrot.lane.b32.xlu0 %v1363, 127
      %v1485 = vpop.permute.xlu0 %1484
      %1486 = vrot.lane.b32.xlu0 %v1365, 127
      %v1487 = vpop.permute.xlu0 %1486
      %v1488 = vsel %vm710, %v1481, %v1485
      %v1489 = vsel %vm710, %v1483, %v1487
      %v1490 = vsel %vm710, %v1485, %v1481
      %v1491 = vsel %vm710, %v1487, %v1483
      %s1492 = scalar_lea.vmem %s9, 160
      %v1493 = vld [vmem:[%s1492] sm:$0xff]
      %v1494 = vld [vmem:[%s1492 + $0x8] sm:$0xff]
      %v1495 = vld [vmem:[%s1492 + $0x10] sm:$0xff]
      %v1496 = vld [vmem:[%s1492 + $0x18] sm:$0xff]
      %v1497 = vmul.f32 %v1488, %v1493
      %v1498 = vmul.f32 %v1490, %v1494
      %v1499 = vmul.f32 %v1489, %v1495
      %v1500 = vmul.f32 %v1491, %v1496
      %v1501 = vadd.f32 %v1476, %v1497
      %v1502 = vadd.f32 %v1477, %v1498
      %v1503 = vadd.f32 %v1478, %v1499
      %v1504 = vadd.f32 %v1479, %v1500
      %1505 = vrot.lane.b32.xlu0 %v1362, 113
      %v1506 = vpop.permute.xlu0 %1505
      %1507 = vrot.lane.b32.xlu0 %v1364, 113
      %v1508 = vpop.permute.xlu0 %1507
      %1509 = vrot.lane.b32.xlu0 %v1363, 113
      %v1510 = vpop.permute.xlu0 %1509
      %1511 = vrot.lane.b32.xlu0 %v1365, 113
      %v1512 = vpop.permute.xlu0 %1511
      %v1513 = vsel %vm736, %v1506, %v1510
      %v1514 = vsel %vm736, %v1508, %v1512
      %v1515 = vsel %vm736, %v1510, %v1506
      %v1516 = vsel %vm736, %v1512, %v1508
      %s1517 = scalar_lea.vmem %s9, 192
      %v1518 = vld [vmem:[%s1517] sm:$0xff]
      %v1519 = vld [vmem:[%s1517 + $0x8] sm:$0xff]
      %v1520 = vld [vmem:[%s1517 + $0x10] sm:$0xff]
      %v1521 = vld [vmem:[%s1517 + $0x18] sm:$0xff]
      %v1522 = vmul.f32 %v1513, %v1518
      %v1523 = vmul.f32 %v1515, %v1519
      %v1524 = vmul.f32 %v1514, %v1520
      %v1525 = vmul.f32 %v1516, %v1521
      %v1526 = vadd.f32 %v1501, %v1522
      %v1527 = vadd.f32 %v1502, %v1523
      %v1528 = vadd.f32 %v1503, %v1524
      %v1529 = vadd.f32 %v1504, %v1525
      %1530 = vrot.lane.b32.xlu0 %v1362, 112
      %v1531 = vpop.permute.xlu0 %1530
      %1532 = vrot.lane.b32.xlu0 %v1364, 112
      %v1533 = vpop.permute.xlu0 %1532
      %1534 = vrot.lane.b32.xlu0 %v1363, 112
      %v1535 = vpop.permute.xlu0 %1534
      %1536 = vrot.lane.b32.xlu0 %v1365, 112
      %v1537 = vpop.permute.xlu0 %1536
      %v1538 = vsel %vm762, %v1531, %v1535
      %v1539 = vsel %vm762, %v1533, %v1537
      %v1540 = vsel %vm762, %v1535, %v1531
      %v1541 = vsel %vm762, %v1537, %v1533
      %s1542 = scalar_lea.vmem %s9, 224
      %v1543 = vld [vmem:[%s1542] sm:$0xff]
      %v1544 = vld [vmem:[%s1542 + $0x8] sm:$0xff]
      %v1545 = vld [vmem:[%s1542 + $0x10] sm:$0xff]
      %v1546 = vld [vmem:[%s1542 + $0x18] sm:$0xff]
      %v1547 = vmul.f32 %v1538, %v1543
      %v1548 = vmul.f32 %v1540, %v1544
      %v1549 = vmul.f32 %v1539, %v1545
      %v1550 = vmul.f32 %v1541, %v1546
      %v1551 = vadd.f32 %v1526, %v1547
      %v1552 = vadd.f32 %v1527, %v1548
      %v1553 = vadd.f32 %v1528, %v1549
      %v1554 = vadd.f32 %v1529, %v1550
      %1555 = vrot.lane.b32.xlu0 %v1362, 111
      %v1556 = vpop.permute.xlu0 %1555
      %1557 = vrot.lane.b32.xlu0 %v1364, 111
      %v1558 = vpop.permute.xlu0 %1557
      %1559 = vrot.lane.b32.xlu0 %v1363, 111
      %v1560 = vpop.permute.xlu0 %1559
      %1561 = vrot.lane.b32.xlu0 %v1365, 111
      %v1562 = vpop.permute.xlu0 %1561
      %v1563 = vsel %vm788, %v1556, %v1560
      %v1564 = vsel %vm788, %v1558, %v1562
      %v1565 = vsel %vm788, %v1560, %v1556
      %v1566 = vsel %vm788, %v1562, %v1558
      %s1567 = scalar_lea.vmem %s9, 256
      %v1568 = vld [vmem:[%s1567] sm:$0xff]
      %v1569 = vld [vmem:[%s1567 + $0x8] sm:$0xff]
      %v1570 = vld [vmem:[%s1567 + $0x10] sm:$0xff]
      %v1571 = vld [vmem:[%s1567 + $0x18] sm:$0xff]
      %v1572 = vmul.f32 %v1563, %v1568
      %v1573 = vmul.f32 %v1565, %v1569
      %v1574 = vmul.f32 %v1564, %v1570
      %v1575 = vmul.f32 %v1566, %v1571
      %v1576 = vadd.f32 %v1551, %v1572
      %v1577 = vadd.f32 %v1552, %v1573
      %v1578 = vadd.f32 %v1553, %v1574
      %v1579 = vadd.f32 %v1554, %v1575
      %v1580 = vld [vmem:[%s10] sm:$0xff]
      %v1581 = vld [vmem:[%s10 + $0x8] sm:$0xff]
      %1583 = vset.pattern.permute.xlu0 0
      %1584 = vperm.xlu0 %1583, %v1580
      %v1585 = vpop.permute.xlu0 %1584
      %1588 = vset.pattern.permute.xlu0 0
      %1589 = vperm.xlu0 %1588, %v1581
      %v1590 = vpop.permute.xlu0 %1589
      %v1592 = vadd.f32 %v1576, %v1585
      %v1593 = vadd.f32 %v1577, %v1585
      %v1594 = vadd.f32 %v1578, %v1590
      %v1595 = vadd.f32 %v1579, %v1590
      %v1597 = vsel %vm822, %v1366, 0
      %v1600 = vsel %vm822, %v1367, 0
      %1602 = vmatprep.subr.mxu0 %v1593
      %1603 = vmatpush1.msra.mxu0 %v1592
      %1604 = vmatprep.subr.mxu0 %v1595
      %1605 = vmatpush1.msra.mxu0 %v1594
      %1606 = vmatprep.subr.mxu0 0.0
      %1607 = vmatpush1.msra.mxu0 0.0
      %1608 = vmatprep.subr.mxu0 0.0
      %1609 = vmatpush1.msra.mxu0 0.0
      %1610 = vmatprep.subr.mxu0 0.0
      %1611 = vmatpush1.msra.mxu0 0.0
      %1612 = vmatprep.subr.mxu0 0.0
      %1613 = vmatpush1.msra.mxu0 0.0
      %1614 = vmatprep.subr.mxu0 0.0
      %1615 = vmatpush1.msra.mxu0 0.0
      %1616 = vmatprep.subr.mxu0 0.0
      %1617 = vmatpush1.msra.mxu0 0.0
      %1618 = vmatprep.subr.mxu0 0.0
      %1619 = vmatpush1.msra.mxu0 0.0
      %1620 = vmatprep.subr.mxu0 0.0
      %1621 = vmatpush1.msra.mxu0 0.0
      %1622 = vmatprep.subr.mxu0 0.0
      %1623 = vmatpush1.msra.mxu0 0.0
      %1624 = vmatprep.subr.mxu0 0.0
      %1625 = vmatpush1.msra.mxu0 0.0
      %1626 = vmatprep.subr.mxu0 0.0
      %1627 = vmatpush1.msra.mxu0 0.0
      %1628 = vmatprep.subr.mxu0 0.0
      %1629 = vmatpush1.msra.mxu0 0.0
      %1630 = vmatprep.subr.mxu0 0.0
      %1631 = vmatpush1.msra.mxu0 0.0
      %1632 = vmatprep.subr.mxu0 0.0
      %1633 = vmatpush1.msra.mxu0 0.0
      %1634 = vmatprep.subr.mxu0 0.0
      %1635 = vmatpush1.msra.mxu0 0.0
      %1636 = vmatprep.subr.mxu0 0.0
      %1637 = vmatpush1.msra.mxu0 0.0
      %1638 = vmatprep.subr.mxu0 0.0
      %1639 = vmatpush1.msra.mxu0 0.0
      %1640 = vmatprep.subr.mxu0 0.0
      %1641 = vmatpush1.msra.mxu0 0.0
      %1642 = vmatprep.subr.mxu0 0.0
      %1643 = vmatpush1.msra.mxu0 0.0
      %1644 = vmatprep.subr.mxu0 0.0
      %1645 = vmatpush1.msra.mxu0 0.0
      %1646 = vmatprep.subr.mxu0 0.0
      %1647 = vmatpush1.msra.mxu0 0.0
      %1648 = vmatprep.subr.mxu0 0.0
      %1649 = vmatpush1.msra.mxu0 0.0
      %1650 = vmatprep.subr.mxu0 0.0
      %1651 = vmatpush1.msra.mxu0 0.0
      %1652 = vmatprep.subr.mxu0 0.0
      %1653 = vmatpush1.msra.mxu0 0.0
      %1654 = vmatprep.subr.mxu0 0.0
      %1655 = vmatpush1.msra.mxu0 0.0
      %1656 = vmatprep.subr.mxu0 0.0
      %1657 = vmatpush1.msra.mxu0 0.0
      %1658 = vmatprep.subr.mxu0 0.0
      %1659 = vmatpush1.msra.mxu0 0.0
      %1660 = vmatprep.subr.mxu0 0.0
      %1661 = vmatpush1.msra.mxu0 0.0
      %1662 = vmatprep.subr.mxu0 0.0
      %1663 = vmatpush1.msra.mxu0 0.0
      %1664 = vmatprep.subr.mxu0 0.0
      %1665 = vmatpush1.msra.mxu0 0.0
      %1666 = vmatprep.mubr.f32.mxu0 0.0
      %1667 = vmatmul.mubr.f32.gmra.mrb[0].mxu0 %v1597
      %v1668 = vpop.f32.mrb[0].mxu0
      %v1669 = vadd.f32 0.0, %v1668
      %v1670 = vpop.f32.mrb[0].mxu0
      %v1671 = vadd.f32 0.0, %v1670
      %1672 = vmatprep.mubr.f32.mxu0 0.0
      %1673 = vmatmul.mubr.f32.gmra.mrb[0].mxu0 %v1600
      %v1674 = vpop.f32.mrb[0].mxu0
      %v1675 = vadd.f32 0.0, %v1674
      %v1676 = vpop.f32.mrb[0].mxu0
      %v1677 = vadd.f32 0.0, %v1676
      %1678 = vdwg.mxu0
      %vm1679 = vcmp.ge.f32.partialorder %v1669, 0.0
      %vm1680 = vcmp.ge.f32.partialorder %v1671, 0.0
      %vm1681 = vcmp.ge.f32.partialorder %v1675, 0.0
      %vm1682 = vcmp.ge.f32.partialorder %v1677, 0.0
      %v1683 = vmul.f32 %v1669, 0.05
      %v1684 = vmul.f32 %v1671, 0.05
      %v1685 = vmul.f32 %v1675, 0.05
      %v1686 = vmul.f32 %v1677, 0.05
      %v1687 = vsel %vm1679, %v1669, %v1683
      %v1688 = vsel %vm1680, %v1671, %v1684
      %v1689 = vsel %vm1681, %v1675, %v1685
      %v1690 = vsel %vm1682, %v1677, %v1686
      %v1691 = vadd.f32 %v1687, %v1688
      %1692 = vadd.xlane.f32.xlu0 %v1691
      %v1693 = vpop.xlane.xlu0 %1692
      %v1694 = vadd.f32 %v1689, %v1690
      %1695 = vadd.xlane.f32.xlu0 %v1694
      %v1696 = vpop.xlane.xlu0 %1695
      %v1697 = vrcp.pop 256.0
      %v1698 = vmul.f32 %v1693, %v1697
      %v1699 = vmul.f32 %v1696, %v1697
      %v1700 = vsub.f32 %v1687, %v1698
      %v1701 = vsub.f32 %v1688, %v1698
      %v1702 = vsub.f32 %v1689, %v1699
      %v1703 = vsub.f32 %v1690, %v1699
      %v1704 = vmul.f32 %v1700, %v1700
      %v1705 = vmul.f32 %v1701, %v1701
      %v1706 = vmul.f32 %v1702, %v1702
      %v1707 = vmul.f32 %v1703, %v1703
      %v1708 = vadd.f32 %v1704, %v1705
      %1709 = vadd.xlane.f32.xlu0 %v1708
      %v1710 = vpop.xlane.xlu0 %1709
      %v1711 = vadd.f32 %v1706, %v1707
      %1712 = vadd.xlane.f32.xlu0 %v1711
      %v1713 = vpop.xlane.xlu0 %1712
      %v1714 = vmul.f32 %v1710, %v1697
      %v1715 = vmul.f32 %v1713, %v1697
      %v1716 = vrsqrt.pop %v1714
      %v1717 = vmul.f32 %v1714, %v1716
      %vm1718 = vcmp.eq.f32.partialorder %v1714, inf
      %v1719 = vsel %vm1718, %v1714, %v1717
      %vm1720 = vcmp.eq.f32.partialorder %v1714, 0.0
      %v1721 = vand.u32 %v1714, 2147483648
      %v1722 = vsel %vm1720, %v1721, %v1719
      %v1723 = vrsqrt.pop %v1715
      %v1724 = vmul.f32 %v1715, %v1723
      %vm1725 = vcmp.eq.f32.partialorder %v1715, inf
      %v1726 = vsel %vm1725, %v1715, %v1724
      %vm1727 = vcmp.eq.f32.partialorder %v1715, 0.0
      %v1728 = vand.u32 %v1715, 2147483648
      %v1729 = vsel %vm1727, %v1728, %v1726
      %v1730 = vadd.f32 %v1722, %v1698
      %v1731 = vadd.f32 %v1729, %v1699
      %v1732 = vld [vmem:[%s12] sm:$0xff]
      %v1733 = vld [vmem:[%s12 + $0x8] sm:$0xff]
      %v1734 = vmul.f32 %v1732, %v1730
      %v1735 = vmul.f32 %v1733, %v1731
      %vm1736 = vcmask 7168
      %v1737 = vsel %vm1736, %v1734, 0.0
      %v1738 = vsel %vm1736, %v1735, 0.0
      %v1739 = vadd.f32 %v1737, %v1738
      %v1740 = vrot.slane %v1739, 4
      %v1741 = vadd.f32 %v1739, %v1740
      %v1742 = vrot.slane %v1741, 2
      %v1743 = vadd.f32 %v1741, %v1742
      %v1744 = vrot.slane %v1743, 1
      %v1745 = vadd.f32 %v1743, %v1744
      %v1746 = vld [vmem:[#allocation2] sm:$0x1]
      %v1747 = vadd.f32 %v1745, %v1746
      %vm1748 = vcmp.ge.f32.partialorder %v1747, 0.0
      %v1749 = vmul.f32 %v1747, 0.05
      %v1750 = vsel %vm1748, %v1747, %v1749
      %v1751 = vld [vmem:[%s14] sm:$0xff]
      %v1752 = vld [vmem:[%s14 + $0x8] sm:$0xff]
      %v1753 = vlaneseq
      %v1754 = vshrl.u32 %v1753, 7
      %v1755 = vsub.s32 0, %v1754
      %v1756 = vrot.slane %v1750, %v1755
      %v1757 = vmul.f32 %v1751, %v1756
      %v1758 = vmul.f32 %v1752, %v1756
      %v1759 = vadd.f32 %v1757, 0.0
      %v1760 = vadd.f32 %v1758, 0.0
      %v1761 = vld [vmem:[%s15] sm:$0xff]
      %v1762 = vld [vmem:[%s15 + $0x8] sm:$0xff]
      %v1763 = vadd.f32 %v1759, %v1761
      %v1764 = vadd.f32 %v1760, %v1762
      %v1765 = vsub.f32 0.0, %v1763
      %v1766 = vsub.f32 0.0, %v1764
      %v1767 = vmul.f32 %v1765, 1.442695
      %v1768 = vpow.pop %v1767
      %v1769 = vmul.f32 %v1766, 1.442695
      %v1770 = vpow.pop %v1769
      %v1771 = vadd.f32 %v1768, 1.0
      %v1772 = vadd.f32 %v1770, 1.0
      %v1773 = vrcp.pop %v1771
      %v1774 = vmul.f32 1.0, %v1773
      %v1775 = vrcp.pop %v1772
      %v1776 = vmul.f32 1.0, %v1775
      %v1777 = vld [vmem:[%s16] sm:$0xff]
      %v1778 = vld [vmem:[%s16 + $0x8] sm:$0xff]
      %1780 = vset.pattern.permute.xlu0 0
      %1781 = vperm.xlu0 %1780, %v1774
      %v1782 = vpop.permute.xlu0 %1781
      %1785 = vset.pattern.permute.xlu0 0
      %1786 = vperm.xlu0 %1785, %v1776
      %v1787 = vpop.permute.xlu0 %1786
      %v1789 = vmul.f32 %v1687, %v1782
      %v1790 = vmul.f32 %v1688, %v1782
      %v1791 = vmul.f32 %v1689, %v1787
      %v1792 = vmul.f32 %v1690, %v1787
      %v1793 = vld [vmem:[%s17] sm:$0xff]
      %v1794 = vld [vmem:[%s17 + $0x8] sm:$0xff]
      %1796 = vset.pattern.permute.xlu0 0
      %1797 = vperm.xlu0 %1796, %v1793
      %v1798 = vpop.permute.xlu0 %1797
      %1801 = vset.pattern.permute.xlu0 0
      %1802 = vperm.xlu0 %1801, %v1794
      %v1803 = vpop.permute.xlu0 %1802
      %v1806 = vsel %vm822, %v1777, 0
      %v1809 = vsel %vm822, %v1778, 0
      %1811 = vmatprep.subr.mxu0 %v1790
      %1812 = vmatpush1.msra.mxu0 %v1789
      %1813 = vmatprep.subr.mxu0 %v1792
      %1814 = vmatpush1.msra.mxu0 %v1791
      %1815 = vmatprep.subr.mxu0 0.0
      %1816 = vmatpush1.msra.mxu0 0.0
      %1817 = vmatprep.subr.mxu0 0.0
      %1818 = vmatpush1.msra.mxu0 0.0
      %1819 = vmatprep.subr.mxu0 0.0
      %1820 = vmatpush1.msra.mxu0 0.0
      %1821 = vmatprep.subr.mxu0 0.0
      %1822 = vmatpush1.msra.mxu0 0.0
      %1823 = vmatprep.subr.mxu0 0.0
      %1824 = vmatpush1.msra.mxu0 0.0
      %1825 = vmatprep.subr.mxu0 0.0
      %1826 = vmatpush1.msra.mxu0 0.0
      %1827 = vmatprep.subr.mxu0 0.0
      %1828 = vmatpush1.msra.mxu0 0.0
      %1829 = vmatprep.subr.mxu0 0.0
      %1830 = vmatpush1.msra.mxu0 0.0
      %1831 = vmatprep.subr.mxu0 0.0
      %1832 = vmatpush1.msra.mxu0 0.0
      %1833 = vmatprep.subr.mxu0 0.0
      %1834 = vmatpush1.msra.mxu0 0.0
      %1835 = vmatprep.subr.mxu0 0.0
      %1836 = vmatpush1.msra.mxu0 0.0
      %1837 = vmatprep.subr.mxu0 0.0
      %1838 = vmatpush1.msra.mxu0 0.0
      %1839 = vmatprep.subr.mxu0 0.0
      %1840 = vmatpush1.msra.mxu0 0.0
      %1841 = vmatprep.subr.mxu0 0.0
      %1842 = vmatpush1.msra.mxu0 0.0
      %1843 = vmatprep.subr.mxu0 0.0
      %1844 = vmatpush1.msra.mxu0 0.0
      %1845 = vmatprep.subr.mxu0 0.0
      %1846 = vmatpush1.msra.mxu0 0.0
      %1847 = vmatprep.subr.mxu0 0.0
      %1848 = vmatpush1.msra.mxu0 0.0
      %1849 = vmatprep.subr.mxu0 0.0
      %1850 = vmatpush1.msra.mxu0 0.0
      %1851 = vmatprep.subr.mxu0 0.0
      %1852 = vmatpush1.msra.mxu0 0.0
      %1853 = vmatprep.subr.mxu0 0.0
      %1854 = vmatpush1.msra.mxu0 0.0
      %1855 = vmatprep.subr.mxu0 0.0
      %1856 = vmatpush1.msra.mxu0 0.0
      %1857 = vmatprep.subr.mxu0 0.0
      %1858 = vmatpush1.msra.mxu0 0.0
      %1859 = vmatprep.subr.mxu0 0.0
      %1860 = vmatpush1.msra.mxu0 0.0
      %1861 = vmatprep.subr.mxu0 0.0
      %1862 = vmatpush1.msra.mxu0 0.0
      %1863 = vmatprep.subr.mxu0 0.0
      %1864 = vmatpush1.msra.mxu0 0.0
      %1865 = vmatprep.subr.mxu0 0.0
      %1866 = vmatpush1.msra.mxu0 0.0
      %1867 = vmatprep.subr.mxu0 0.0
      %1868 = vmatpush1.msra.mxu0 0.0
      %1869 = vmatprep.subr.mxu0 0.0
      %1870 = vmatpush1.msra.mxu0 0.0
      %1871 = vmatprep.subr.mxu0 0.0
      %1872 = vmatpush1.msra.mxu0 0.0
      %1873 = vmatprep.subr.mxu0 0.0
      %1874 = vmatpush1.msra.mxu0 0.0
      %1875 = vmatprep.mubr.f32.mxu0 0.0
      %1876 = vmatmul.mubr.f32.gmra.mrb[0].mxu0 %v1806
      %v1877 = vpop.f32.mrb[0].mxu0
      %v1878 = vadd.f32 %v1798, %v1877
      %v1879 = vpop.f32.mrb[0].mxu0
      %v1880 = vadd.f32 %v1798, %v1879
      %1881 = vmatprep.mubr.f32.mxu0 0.0
      %1882 = vmatmul.mubr.f32.gmra.mrb[0].mxu0 %v1809
      %v1883 = vpop.f32.mrb[0].mxu0
      %v1884 = vadd.f32 %v1803, %v1883
      %v1885 = vpop.f32.mrb[0].mxu0
      %v1886 = vadd.f32 %v1803, %v1885
      %1887 = vdwg.mxu0
      %v1888 = vadd.f32 %v1878, %v578
      %v1889 = vadd.f32 %v1880, %v579
      %v1890 = vadd.f32 %v1884, %v580
      %v1891 = vadd.f32 %v1886, %v581
      %1892 = vst [vmem:[%s577] sm:$0xff] %v1888
      %1893 = vst [vmem:[%s577 + $0x8] sm:$0xff] %v1889
      %1894 = vst [vmem:[%s577 + $0x10] sm:$0xff] %v1890
      %1895 = vst [vmem:[%s577 + $0x18] sm:$0xff] %v1891
      %p1896 = scmp.lt.s32.totalorder %s31, 1
      %s1897 = scalar_select %p1896, %s31, 1
      %s1898 = smul.addr %s1897, 4
      %s1899 = smul.addr %s1898, 8
      %s1900 = scalar_lea.vmem %s18, %s1899
      // Predicated region
      $region93: #{rlfb2_pallas.1} parent=91 // pred_check
        %p1901 = pneg %p432
      $region94: #{rlfb2_pallas.1} parent=91 // pred_check_branch
        %1903 = sbr.rel (%p1901) target = $region96
      $region95: #{rlfb2_pallas.1} parent=91 // pred_region
        _
      $region96: #{rlfb2_pallas.1} parent=91 // pred_fallthru
        _
    $region92: #{rlfb2_pallas.1} parent=5 // pred_fallthru
      _
    %p1904 = scmp.le.s32.totalorder 2, %s26
    // Predicated region
    $region97: #{rlfb2_pallas.1} parent=5 // pred_check
      %p1905 = pneg %p1904
    $region98: #{rlfb2_pallas.1} parent=5 // pred_check_branch
      %1907 = sbr.rel (%p1905) target = $region100
    $region99: #{rlfb2_pallas.1} parent=5 // pred_region
      %s1908 = ssub.s32 %s26, 2
      // Predicated region
      $region101: #{rlfb2_pallas.1} parent=99 // pred_check
        %p1909 = pneg %p438
      $region102: #{rlfb2_pallas.1} parent=99 // pred_check_branch
        %1911 = sbr.rel (%p1909) target = $region104
      $region103: #{rlfb2_pallas.1} parent=99 // pred_region
        %p1912 = scmp.lt.s32.totalorder %s32, 1
        %s1913 = scalar_select %p1912, %s32, 1
        %s1914 = smul.addr %s1913, 4
        %s1915 = smul.addr %s1914, 8
        %s1916 = scalar_lea.vmem %s18, %s1915
      $region104: #{rlfb2_pallas.1} parent=99 // pred_fallthru
        _
    $region100: #{rlfb2_pallas.1} parent=5 // pred_fallthru
      _
  $region6: #{rlfb2_pallas.1} parent=0 // loop_footer
    %s30 = sadd.s32 1, %s26
  $region7: #{rlfb2_pallas.1} parent=0 // loop_footer_branch
    %25 = sbr.rel target = $region3
  $region8: #{rlfb2_pallas.1} parent=0 // loop_exit
    _

</llo_original>
